<compile_context>
chip_gen: v5e
topology: v5e:2x2
jax: 0.10.0
libtpu: 0.0.40
codegen_flags: <defaults>
</compile_context>

<pallas_src>
import functools

import jax
import jax.numpy as jnp
import numpy as np
from jax import lax
from jax.experimental import pallas as pl
from jax.experimental.pallas import tpu as pltpu


# ---------------------------------------------------------------------------
# Fused flash-style kernel: QKV projections + online-softmax attention + out proj
# ---------------------------------------------------------------------------
def _flash_cross_attention_kernel(
    x_ref, c_ref, wq_ref, wk_ref, wv_ref, wo_ref, bo_ref,   # inputs
    o_ref,                                                   # output
    m_ref, l_ref, acc_ref,                                   # scratch
    *, heads, compute_dtype):
    """One (batch, q-tile, kv-tile) grid step.

    x_ref:  (1, TQ, Dq)          c_ref:  (1, TK, Dc)
    wq_ref: (heads, Dq, dh)      wk_ref/wv_ref: (heads, Dc, dh)
    wo_ref: (heads, dh, Dq)      bo_ref: (1, Dq) f32
    o_ref:  (1, TQ, Dq)
    m_ref/l_ref: (heads, TQ, 1) f32   acc_ref: (heads, TQ, dh) f32
    """
    ki = pl.program_id(2)

    @pl.when(ki == 0)
    def _init():
        m_ref[...] = jnp.full(m_ref.shape, -jnp.inf, dtype=jnp.float32)
        l_ref[...] = jnp.zeros(l_ref.shape, dtype=jnp.float32)
        acc_ref[...] = jnp.zeros(acc_ref.shape, dtype=jnp.float32)

    cdt = compute_dtype
    x = x_ref[0].astype(cdt)        # (TQ, Dq)  -- MXU operand dtype
    c = c_ref[0].astype(cdt)        # (TK, Dc)

    # Static (unrolled) loop over heads; head picked via free leading-axis index.
    for h in range(heads):
        # Projections: contraction depth = Dq / Dc (full feature dim), f32 accumulate.
        qh = jnp.dot(x, wq_ref[h], preferred_element_type=jnp.float32)   # (TQ, dh), scale pre-folded
        kh = jnp.dot(c, wk_ref[h], preferred_element_type=jnp.float32)   # (TK, dh)
        vh = jnp.dot(c, wv_ref[h], preferred_element_type=jnp.float32)   # (TK, dh)

        # q @ k^T without transposing k (contract the last dims).
        sim = lax.dot_general(
            qh.astype(cdt), kh.astype(cdt),
            dimension_numbers=(((1,), (1,)), ((), ())),
            preferred_element_type=jnp.float32)                          # (TQ, TK)

        # Online (flash-style) softmax update -- all f32 on the VPU/EUP.
        m_prev = m_ref[h]                                                # (TQ, 1)
        m_new = jnp.maximum(m_prev, jnp.max(sim, axis=-1, keepdims=True))
        alpha = jnp.exp(m_prev - m_new)
        p = jnp.exp(sim - m_new)                                         # (TQ, TK)
        l_ref[h] = alpha * l_ref[h] + jnp.sum(p, axis=-1, keepdims=True)
        acc_ref[h] = alpha * acc_ref[h] + jnp.dot(
            p.astype(cdt), vh.astype(cdt), preferred_element_type=jnp.float32)
        m_ref[h] = m_new

    @pl.when(ki == pl.num_programs(2) - 1)
    def _finalize():
        tq, dq = o_ref.shape[-2], o_ref.shape[-1]
        out = jnp.zeros((tq, dq), dtype=jnp.float32)
        for h in range(heads):
            # Exact divide (not the approx EUP reciprocal) for reference parity.
            oh = acc_ref[h] / l_ref[h]                                   # (TQ, dh)
            # Per-head slice of the output projection: sum_h out_h @ Wo^T[h].
            out = out + jnp.dot(oh.astype(compute_dtype), wo_ref[h],
                                preferred_element_type=jnp.float32)
        o_ref[0] = (out + bo_ref[...]).astype(o_ref.dtype)


# ---------------------------------------------------------------------------
# Parameter prep (one-time, off the hot path)
# ---------------------------------------------------------------------------
def prepare_cross_attention_params(params, heads, compute_dtype=jnp.bfloat16):
    """PyTorch (out_features, in_features) weights -> head-major, matmul-ready layout.

    Returns:
      wq: (heads, Dq, dh) with the softmax scale folded in
      wk: (heads, Dc, dh)
      wv: (heads, Dc, dh)
      wo: (heads, dh, Dq)
      bias: (1, Dq) float32 (bias add stays in f32)
    All weights are cast to `compute_dtype` (bf16 for production; f32 for parity tests).
    """
    wq, wk, wv, wo, bo = params
    inner, dq = wq.shape
    dc = wk.shape[1]
    dh = inner // heads
    scale = dh ** (-0.5)

    wq_hm = (jnp.asarray(wq).T * scale).reshape(dq, heads, dh).transpose(1, 0, 2)
    wk_hm = jnp.asarray(wk).T.reshape(dc, heads, dh).transpose(1, 0, 2)
    wv_hm = jnp.asarray(wv).T.reshape(dc, heads, dh).transpose(1, 0, 2)
    wo_hm = jnp.asarray(wo).T.reshape(heads, dh, dq)
    bo2d = jnp.asarray(bo).reshape(1, dq).astype(jnp.float32)

    cdt = compute_dtype
    return (wq_hm.astype(cdt), wk_hm.astype(cdt), wv_hm.astype(cdt),
            wo_hm.astype(cdt), bo2d)


# ---------------------------------------------------------------------------
# Wrapper
# ---------------------------------------------------------------------------
def cross_attention_forward(x, prepared_params, heads, context=None,
                            q_tile=None, kv_tile=None):
    """Reproduces CrossAttention.forward (mask=None, dropout=0) in one pallas_call."""
    wq_hm, wk_hm, wv_hm, wo_hm, bo2d = prepared_params
    B, N, Dq = x.shape
    # Self-attention path: reuse x as the context operand. With separate
    # q-tile / kv-tile index maps each role fetches its own block, so no
    # per-step duplicate DMA of an identical tile.
    ctx = x if context is None else context
    _, M, Dc = ctx.shape
    _, _, dh = wq_hm.shape
    inner = heads * dh
    compute_dtype = wq_hm.dtype

    # Tile sizes: 256 fills the v6e/v7x MXU M-dimension; fall back to the full
    # (small) sequence when it does not divide evenly.
    if q_tile is None:
        q_tile = 256 if N % 256 == 0 else N
    if kv_tile is None:
        kv_tile = 256 if M % 256 == 0 else M
    assert N % q_tile == 0 and M % kv_tile == 0

    grid = (B, N // q_tile, M // kv_tile)

    # Advisory cost estimate for XLA's scheduler (approximate).
    flops = 2 * B * (N * Dq * inner                              # q projection
                     + 2 * (N // q_tile) * M * Dc * inner        # k/v projections
                     + 2 * N * M * inner                         # q@k^T and p@v
                     + N * inner * Dq)                           # output projection
    bytes_accessed = (x.size * x.dtype.itemsize + ctx.size * ctx.dtype.itemsize
                      + sum(int(w.size) * w.dtype.itemsize
                            for w in (wq_hm, wk_hm, wv_hm, wo_hm, bo2d))
                      + B * N * Dq * x.dtype.itemsize)

    kernel = functools.partial(_flash_cross_attention_kernel,
                               heads=heads, compute_dtype=compute_dtype)

    return pl.pallas_call(
        kernel,
        out_shape=jax.ShapeDtypeStruct((B, N, Dq), x.dtype),
        grid=grid,
        in_specs=[
            pl.BlockSpec((1, q_tile, Dq), lambda b, qi, ki: (b, qi, 0)),   # x tile
            pl.BlockSpec((1, kv_tile, Dc), lambda b, qi, ki: (b, ki, 0)),  # ctx tile
            pl.BlockSpec((heads, Dq, dh), lambda b, qi, ki: (0, 0, 0)),    # Wq (resident)
            pl.BlockSpec((heads, Dc, dh), lambda b, qi, ki: (0, 0, 0)),    # Wk (resident)
            pl.BlockSpec((heads, Dc, dh), lambda b, qi, ki: (0, 0, 0)),    # Wv (resident)
            pl.BlockSpec((heads, dh, Dq), lambda b, qi, ki: (0, 0, 0)),    # Wo (resident)
            pl.BlockSpec((1, Dq), lambda b, qi, ki: (0, 0)),               # bias
        ],
        out_specs=pl.BlockSpec((1, q_tile, Dq), lambda b, qi, ki: (b, qi, 0)),
        scratch_shapes=[
            pltpu.VMEM((heads, q_tile, 1), jnp.float32),    # running max
            pltpu.VMEM((heads, q_tile, 1), jnp.float32),    # running sum
            pltpu.VMEM((heads, q_tile, dh), jnp.float32),   # output accumulator
        ],
        compiler_params=pltpu.CompilerParams(
            dimension_semantics=("parallel", "parallel", "arbitrary")),
        cost_estimate=pl.CostEstimate(
            flops=int(flops),
            transcendentals=int(B * heads * N * M),
            bytes_accessed=int(bytes_accessed)),
    )(x, ctx, wq_hm, wk_hm, wv_hm, wo_hm, bo2d)


# ---------------------------------------------------------------------------
# Pure-JAX reference (correctness check)
# ---------------------------------------------------------------------------
def cross_attention_reference(x, params, heads, context=None):
    wq, wk, wv, wo, bo = params
    B, N, _ = x.shape
    ctx = x if context is None else context
    M = ctx.shape[1]
    inner = wq.shape[0]
    dh = inner // heads
    scale = dh ** (-0.5)

    q = x @ wq.T
    k = ctx @ wk.T
    v = ctx @ wv.T
    q = q.reshape(B, N, heads, dh).transpose(0, 2, 1, 3)
    k = k.reshape(B, M, heads, dh).transpose(0, 2, 1, 3)
    v = v.reshape(B, M, heads, dh).transpose(0, 2, 1, 3)
    sim = jnp.einsum("bhid,bhjd->bhij", q, k) * scale
    attn = jax.nn.softmax(sim, axis=-1)
    out = jnp.einsum("bhij,bhjd->bhid", attn, v)
    out = out.transpose(0, 2, 1, 3).reshape(B, N, inner)
    return out @ wo.T + bo


# ---------------------------------------------------------------------------
# Main
# ---------------------------------------------------------------------------
if __name__ == "__main__":
    # Small shapes consistent with the module.
    B, N, M = 2, 8, 8
    query_dim = 32
    context_dim = 32
    heads = 4
    dim_head = 8
    inner = heads * dim_head

    key = jax.random.PRNGKey(0)
    kx, kc, kq, kk, kv, ko, kb = jax.random.split(key, 7)

    x = jax.random.normal(kx, (B, N, query_dim), dtype=jnp.float32)
    context = jax.random.normal(kc, (B, M, context_dim), dtype=jnp.float32)

    # Deterministic parameter init (PyTorch weight layout: (out_features, in_features)).
    wq = 0.05 * jax.random.normal(kq, (inner, query_dim), dtype=jnp.float32)
    wk = 0.05 * jax.random.normal(kk, (inner, context_dim), dtype=jnp.float32)
    wv = 0.05 * jax.random.normal(kv, (inner, context_dim), dtype=jnp.float32)
    wo = 0.05 * jax.random.normal(ko, (query_dim, inner), dtype=jnp.float32)
    bo = 0.01 * jax.random.normal(kb, (query_dim,), dtype=jnp.float32)
    params = (wq, wk, wv, wo, bo)

    y_ref = cross_attention_reference(x, params, heads, context=context)

    # 1) f32 MXU operands: tight parity check against the pure-JAX reference
    #    (exact softmax divide -> differences are only matmul-ordering noise).
    prepared_f32 = prepare_cross_attention_params(params, heads,
                                                  compute_dtype=jnp.float32)
    y_f32 = jax.block_until_ready(
        cross_attention_forward(x, prepared_f32, heads, context=context))
    np.testing.assert_allclose(np.asarray(y_f32), np.asarray(y_ref),
                               rtol=2e-3, atol=1e-4)

    # 2) bf16 MXU operands (production path on v5e/v6e/v7x): loose sanity check
    #    -- softmax / accumulation stay in f32, only matmul operands are bf16.
    prepared_bf16 = prepare_cross_attention_params(params, heads,
                                                   compute_dtype=jnp.bfloat16)
    y_bf16 = jax.block_until_ready(
        cross_attention_forward(x, prepared_bf16, heads, context=context))
    np.testing.assert_allclose(np.asarray(y_bf16), np.asarray(y_ref),
                               rtol=1e-1, atol=1e-2)

    print("KERNEL_OK")
</pallas_src>

<mosaic_0001>
module attributes {stable_mosaic.version = 11 : i64} {
  func.func @_flash_cross_attention_kernel(%arg0: i32, %arg1: i32, %arg2: i32, %arg3: memref<1x8x32xf32, #tpu.memory_space<vmem>>, %arg4: memref<1x8x32xf32, #tpu.memory_space<vmem>>, %arg5: memref<4x32x8xf32, #tpu.memory_space<vmem>>, %arg6: memref<4x32x8xf32, #tpu.memory_space<vmem>>, %arg7: memref<4x32x8xf32, #tpu.memory_space<vmem>>, %arg8: memref<4x8x32xf32, #tpu.memory_space<vmem>>, %arg9: memref<1x32xf32, #tpu.memory_space<vmem>>, %arg10: memref<1x8x32xf32, #tpu.memory_space<vmem>>, %arg11: memref<4x8x1xf32, #tpu.memory_space<vmem>>, %arg12: memref<4x8x1xf32, #tpu.memory_space<vmem>>, %arg13: memref<4x8x8xf32, #tpu.memory_space<vmem>>) attributes {dimension_semantics = [#tpu.dimension_semantics<parallel>, #tpu.dimension_semantics<parallel>, #tpu.dimension_semantics<arbitrary>], iteration_bounds = array<i64: 2, 1, 1>, scalar_prefetch = 0 : i64, scratch_operands = 3 : i64, tpu.core_type = #tpu.core_type<tc>, window_params = [{transform_indices = @transform_0, window_bounds = array<i64: 1, 8, 32>}, {transform_indices = @transform_1, window_bounds = array<i64: 1, 8, 32>}, {pipeline_mode = #tpu.pipeline_mode<synchronous>, transform_indices = @transform_2, window_bounds = array<i64: 4, 32, 8>}, {pipeline_mode = #tpu.pipeline_mode<synchronous>, transform_indices = @transform_3, window_bounds = array<i64: 4, 32, 8>}, {pipeline_mode = #tpu.pipeline_mode<synchronous>, transform_indices = @transform_4, window_bounds = array<i64: 4, 32, 8>}, {pipeline_mode = #tpu.pipeline_mode<synchronous>, transform_indices = @transform_5, window_bounds = array<i64: 4, 8, 32>}, {pipeline_mode = #tpu.pipeline_mode<synchronous>, transform_indices = @transform_6, window_bounds = array<i64: 1, 32>}, {transform_indices = @transform_7, window_bounds = array<i64: 1, 8, 32>}]} {
    %c0_i32 = arith.constant 0 : i32
    %0 = arith.cmpi eq, %arg2, %c0_i32 : i32
    %1 = arith.extui %0 : i1 to i32
    %c0_i32_0 = arith.constant 0 : i32
    %2 = arith.cmpi ne, %1, %c0_i32_0 : i32
    scf.if %2 {
      %cst_140 = arith.constant 0xFF800000 : f32
      %174 = vector.broadcast %cst_140 : f32 to vector<4x8x1xf32>
      %c0_141 = arith.constant 0 : index
      %c0_142 = arith.constant 0 : index
      %c0_143 = arith.constant 0 : index
      %175 = vector.load %arg11[%c0_141, %c0_142, %c0_143] : memref<4x8x1xf32, #tpu.memory_space<vmem>>, vector<4x8x1xf32>
      tpu.vector_store %arg11[%c0_141, %c0_142, %c0_143], %174 {strides = array<i32>} : memref<4x8x1xf32, #tpu.memory_space<vmem>>, vector<4x8x1xf32>,
      %cst_144 = arith.constant 0.000000e+00 : f32
      %176 = vector.broadcast %cst_144 : f32 to vector<4x8x1xf32>
      %c0_145 = arith.constant 0 : index
      %c0_146 = arith.constant 0 : index
      %c0_147 = arith.constant 0 : index
      %177 = vector.load %arg12[%c0_145, %c0_146, %c0_147] : memref<4x8x1xf32, #tpu.memory_space<vmem>>, vector<4x8x1xf32>
      tpu.vector_store %arg12[%c0_145, %c0_146, %c0_147], %176 {strides = array<i32>} : memref<4x8x1xf32, #tpu.memory_space<vmem>>, vector<4x8x1xf32>,
      %cst_148 = arith.constant 0.000000e+00 : f32
      %178 = vector.broadcast %cst_148 : f32 to vector<4x8x8xf32>
      %c0_149 = arith.constant 0 : index
      %c0_150 = arith.constant 0 : index
      %c0_151 = arith.constant 0 : index
      %179 = vector.load %arg13[%c0_149, %c0_150, %c0_151] : memref<4x8x8xf32, #tpu.memory_space<vmem>>, vector<4x8x8xf32>
      tpu.vector_store %arg13[%c0_149, %c0_150, %c0_151], %178 {strides = array<i32>} : memref<4x8x8xf32, #tpu.memory_space<vmem>>, vector<4x8x8xf32>,
    } else {
    }
    %c0 = arith.constant 0 : index
    %c0_1 = arith.constant 0 : index
    %c0_2 = arith.constant 0 : index
    %3 = vector.load %arg3[%c0, %c0_1, %c0_2] : memref<1x8x32xf32, #tpu.memory_space<vmem>>, vector<1x8x32xf32>
    %4 = vector.shape_cast %3 : vector<1x8x32xf32> to vector<8x32xf32>
    %c0_3 = arith.constant 0 : index
    %c0_4 = arith.constant 0 : index
    %c0_5 = arith.constant 0 : index
    %5 = vector.load %arg4[%c0_3, %c0_4, %c0_5] : memref<1x8x32xf32, #tpu.memory_space<vmem>>, vector<1x8x32xf32>
    %6 = vector.shape_cast %5 : vector<1x8x32xf32> to vector<8x32xf32>
    %c0_6 = arith.constant 0 : index
    %c0_7 = arith.constant 0 : index
    %c0_8 = arith.constant 0 : index
    %7 = vector.load %arg5[%c0_6, %c0_7, %c0_8] : memref<4x32x8xf32, #tpu.memory_space<vmem>>, vector<1x32x8xf32>
    %8 = vector.shape_cast %7 : vector<1x32x8xf32> to vector<32x8xf32>
    %cst = arith.constant dense<0.000000e+00> : vector<8x8xf32>
    %9 = tpu.matmul %4, %8, %cst {dimension_numbers = #tpu.dot_dimension_numbers<[1], [0], [0], [1], [0, 0, 1, 1], [], []>} : vector<8x32xf32>, vector<32x8xf32>, vector<8x8xf32> -> vector<8x8xf32>
    %c0_9 = arith.constant 0 : index
    %c0_10 = arith.constant 0 : index
    %c0_11 = arith.constant 0 : index
    %10 = vector.load %arg6[%c0_9, %c0_10, %c0_11] : memref<4x32x8xf32, #tpu.memory_space<vmem>>, vector<1x32x8xf32>
    %11 = vector.shape_cast %10 : vector<1x32x8xf32> to vector<32x8xf32>
    %cst_12 = arith.constant dense<0.000000e+00> : vector<8x8xf32>
    %12 = tpu.matmul %6, %11, %cst_12 {dimension_numbers = #tpu.dot_dimension_numbers<[1], [0], [0], [1], [0, 0, 1, 1], [], []>} : vector<8x32xf32>, vector<32x8xf32>, vector<8x8xf32> -> vector<8x8xf32>
    %c0_13 = arith.constant 0 : index
    %c0_14 = arith.constant 0 : index
    %c0_15 = arith.constant 0 : index
    %13 = vector.load %arg7[%c0_13, %c0_14, %c0_15] : memref<4x32x8xf32, #tpu.memory_space<vmem>>, vector<1x32x8xf32>
    %14 = vector.shape_cast %13 : vector<1x32x8xf32> to vector<32x8xf32>
    %cst_16 = arith.constant dense<0.000000e+00> : vector<8x8xf32>
    %15 = tpu.matmul %6, %14, %cst_16 {dimension_numbers = #tpu.dot_dimension_numbers<[1], [0], [0], [1], [0, 0, 1, 1], [], []>} : vector<8x32xf32>, vector<32x8xf32>, vector<8x8xf32> -> vector<8x8xf32>
    %cst_17 = arith.constant dense<0.000000e+00> : vector<8x8xf32>
    %16 = tpu.matmul %9, %12, %cst_17 {dimension_numbers = #tpu.dot_dimension_numbers<[1], [1], [0], [0], [0, 0, 1, 0], [], []>} : vector<8x8xf32>, vector<8x8xf32>, vector<8x8xf32> -> vector<8x8xf32>
    %c0_18 = arith.constant 0 : index
    %c0_19 = arith.constant 0 : index
    %c0_20 = arith.constant 0 : index
    %17 = vector.load %arg11[%c0_18, %c0_19, %c0_20] : memref<4x8x1xf32, #tpu.memory_space<vmem>>, vector<1x8x1xf32>
    %18 = vector.shape_cast %17 : vector<1x8x1xf32> to vector<8x1xf32>
    %cst_21 = arith.constant dense<0xFF800000> : vector<8xf32>
    %19 = vector.multi_reduction <maximumf>, %16, %cst_21 [1] : vector<8x8xf32> to vector<8xf32>
    %20 = vector.shape_cast %19 : vector<8xf32> to vector<8x1xf32>
    %21 = arith.maximumf %18, %20 : vector<8x1xf32>
    %22 = arith.subf %18, %21 : vector<8x1xf32>
    %23 = math.exp %22 : vector<8x1xf32>
    %24 = vector.broadcast %21 : vector<8x1xf32> to vector<8x8xf32>
    %25 = arith.subf %16, %24 : vector<8x8xf32>
    %26 = math.exp %25 : vector<8x8xf32>
    %c0_22 = arith.constant 0 : index
    %c0_23 = arith.constant 0 : index
    %c0_24 = arith.constant 0 : index
    %27 = vector.load %arg12[%c0_22, %c0_23, %c0_24] : memref<4x8x1xf32, #tpu.memory_space<vmem>>, vector<1x8x1xf32>
    %28 = vector.shape_cast %27 : vector<1x8x1xf32> to vector<8x1xf32>
    %29 = arith.mulf %23, %28 : vector<8x1xf32>
    %cst_25 = arith.constant dense<0.000000e+00> : vector<8xf32>
    %30 = vector.multi_reduction <add>, %26, %cst_25 [1] : vector<8x8xf32> to vector<8xf32>
    %31 = vector.shape_cast %30 : vector<8xf32> to vector<8x1xf32>
    %32 = arith.addf %29, %31 : vector<8x1xf32>
    %c0_26 = arith.constant 0 : index
    %c0_27 = arith.constant 0 : index
    %c0_28 = arith.constant 0 : index
    %33 = vector.load %arg12[%c0_26, %c0_27, %c0_28] : memref<4x8x1xf32, #tpu.memory_space<vmem>>, vector<1x8x1xf32>
    %34 = vector.shape_cast %33 : vector<1x8x1xf32> to vector<8x1xf32>
    %35 = vector.shape_cast %32 : vector<8x1xf32> to vector<1x8x1xf32>
    tpu.vector_store %arg12[%c0_26, %c0_27, %c0_28], %35 {strides = array<i32>} : memref<4x8x1xf32, #tpu.memory_space<vmem>>, vector<1x8x1xf32>,
    %c0_29 = arith.constant 0 : index
    %c0_30 = arith.constant 0 : index
    %c0_31 = arith.constant 0 : index
    %36 = vector.load %arg13[%c0_29, %c0_30, %c0_31] : memref<4x8x8xf32, #tpu.memory_space<vmem>>, vector<1x8x8xf32>
    %37 = vector.shape_cast %36 : vector<1x8x8xf32> to vector<8x8xf32>
    %38 = vector.broadcast %23 : vector<8x1xf32> to vector<8x8xf32>
    %39 = arith.mulf %38, %37 : vector<8x8xf32>
    %cst_32 = arith.constant dense<0.000000e+00> : vector<8x8xf32>
    %40 = tpu.matmul %26, %15, %cst_32 {dimension_numbers = #tpu.dot_dimension_numbers<[1], [0], [0], [1], [0, 0, 1, 1], [], []>} : vector<8x8xf32>, vector<8x8xf32>, vector<8x8xf32> -> vector<8x8xf32>
    %41 = arith.addf %39, %40 : vector<8x8xf32>
    %c0_33 = arith.constant 0 : index
    %c0_34 = arith.constant 0 : index
    %c0_35 = arith.constant 0 : index
    %42 = vector.load %arg13[%c0_33, %c0_34, %c0_35] : memref<4x8x8xf32, #tpu.memory_space<vmem>>, vector<1x8x8xf32>
    %43 = vector.shape_cast %42 : vector<1x8x8xf32> to vector<8x8xf32>
    %44 = vector.shape_cast %41 : vector<8x8xf32> to vector<1x8x8xf32>
    tpu.vector_store %arg13[%c0_33, %c0_34, %c0_35], %44 {strides = array<i32>} : memref<4x8x8xf32, #tpu.memory_space<vmem>>, vector<1x8x8xf32>,
    %c0_36 = arith.constant 0 : index
    %c0_37 = arith.constant 0 : index
    %c0_38 = arith.constant 0 : index
    %45 = vector.load %arg11[%c0_36, %c0_37, %c0_38] : memref<4x8x1xf32, #tpu.memory_space<vmem>>, vector<1x8x1xf32>
    %46 = vector.shape_cast %45 : vector<1x8x1xf32> to vector<8x1xf32>
    %47 = vector.shape_cast %21 : vector<8x1xf32> to vector<1x8x1xf32>
    tpu.vector_store %arg11[%c0_36, %c0_37, %c0_38], %47 {strides = array<i32>} : memref<4x8x1xf32, #tpu.memory_space<vmem>>, vector<1x8x1xf32>,
    %c1 = arith.constant 1 : index
    %c0_39 = arith.constant 0 : index
    %c0_40 = arith.constant 0 : index
    %48 = vector.load %arg5[%c1, %c0_39, %c0_40] : memref<4x32x8xf32, #tpu.memory_space<vmem>>, vector<1x32x8xf32>
    %49 = vector.shape_cast %48 : vector<1x32x8xf32> to vector<32x8xf32>
    %cst_41 = arith.constant dense<0.000000e+00> : vector<8x8xf32>
    %50 = tpu.matmul %4, %49, %cst_41 {dimension_numbers = #tpu.dot_dimension_numbers<[1], [0], [0], [1], [0, 0, 1, 1], [], []>} : vector<8x32xf32>, vector<32x8xf32>, vector<8x8xf32> -> vector<8x8xf32>
    %c1_42 = arith.constant 1 : index
    %c0_43 = arith.constant 0 : index
    %c0_44 = arith.constant 0 : index
    %51 = vector.load %arg6[%c1_42, %c0_43, %c0_44] : memref<4x32x8xf32, #tpu.memory_space<vmem>>, vector<1x32x8xf32>
    %52 = vector.shape_cast %51 : vector<1x32x8xf32> to vector<32x8xf32>
    %cst_45 = arith.constant dense<0.000000e+00> : vector<8x8xf32>
    %53 = tpu.matmul %6, %52, %cst_45 {dimension_numbers = #tpu.dot_dimension_numbers<[1], [0], [0], [1], [0, 0, 1, 1], [], []>} : vector<8x32xf32>, vector<32x8xf32>, vector<8x8xf32> -> vector<8x8xf32>
    %c1_46 = arith.constant 1 : index
    %c0_47 = arith.constant 0 : index
    %c0_48 = arith.constant 0 : index
    %54 = vector.load %arg7[%c1_46, %c0_47, %c0_48] : memref<4x32x8xf32, #tpu.memory_space<vmem>>, vector<1x32x8xf32>
    %55 = vector.shape_cast %54 : vector<1x32x8xf32> to vector<32x8xf32>
    %cst_49 = arith.constant dense<0.000000e+00> : vector<8x8xf32>
    %56 = tpu.matmul %6, %55, %cst_49 {dimension_numbers = #tpu.dot_dimension_numbers<[1], [0], [0], [1], [0, 0, 1, 1], [], []>} : vector<8x32xf32>, vector<32x8xf32>, vector<8x8xf32> -> vector<8x8xf32>
    %cst_50 = arith.constant dense<0.000000e+00> : vector<8x8xf32>
    %57 = tpu.matmul %50, %53, %cst_50 {dimension_numbers = #tpu.dot_dimension_numbers<[1], [1], [0], [0], [0, 0, 1, 0], [], []>} : vector<8x8xf32>, vector<8x8xf32>, vector<8x8xf32> -> vector<8x8xf32>
    %c1_51 = arith.constant 1 : index
    %c0_52 = arith.constant 0 : index
    %c0_53 = arith.constant 0 : index
    %58 = vector.load %arg11[%c1_51, %c0_52, %c0_53] : memref<4x8x1xf32, #tpu.memory_space<vmem>>, vector<1x8x1xf32>
    %59 = vector.shape_cast %58 : vector<1x8x1xf32> to vector<8x1xf32>
    %cst_54 = arith.constant dense<0xFF800000> : vector<8xf32>
    %60 = vector.multi_reduction <maximumf>, %57, %cst_54 [1] : vector<8x8xf32> to vector<8xf32>
    %61 = vector.shape_cast %60 : vector<8xf32> to vector<8x1xf32>
    %62 = arith.maximumf %59, %61 : vector<8x1xf32>
    %63 = arith.subf %59, %62 : vector<8x1xf32>
    %64 = math.exp %63 : vector<8x1xf32>
    %65 = vector.broadcast %62 : vector<8x1xf32> to vector<8x8xf32>
    %66 = arith.subf %57, %65 : vector<8x8xf32>
    %67 = math.exp %66 : vector<8x8xf32>
    %c1_55 = arith.constant 1 : index
    %c0_56 = arith.constant 0 : index
    %c0_57 = arith.constant 0 : index
    %68 = vector.load %arg12[%c1_55, %c0_56, %c0_57] : memref<4x8x1xf32, #tpu.memory_space<vmem>>, vector<1x8x1xf32>
    %69 = vector.shape_cast %68 : vector<1x8x1xf32> to vector<8x1xf32>
    %70 = arith.mulf %64, %69 : vector<8x1xf32>
    %cst_58 = arith.constant dense<0.000000e+00> : vector<8xf32>
    %71 = vector.multi_reduction <add>, %67, %cst_58 [1] : vector<8x8xf32> to vector<8xf32>
    %72 = vector.shape_cast %71 : vector<8xf32> to vector<8x1xf32>
    %73 = arith.addf %70, %72 : vector<8x1xf32>
    %c1_59 = arith.constant 1 : index
    %c0_60 = arith.constant 0 : index
    %c0_61 = arith.constant 0 : index
    %74 = vector.load %arg12[%c1_59, %c0_60, %c0_61] : memref<4x8x1xf32, #tpu.memory_space<vmem>>, vector<1x8x1xf32>
    %75 = vector.shape_cast %74 : vector<1x8x1xf32> to vector<8x1xf32>
    %76 = vector.shape_cast %73 : vector<8x1xf32> to vector<1x8x1xf32>
    tpu.vector_store %arg12[%c1_59, %c0_60, %c0_61], %76 {strides = array<i32>} : memref<4x8x1xf32, #tpu.memory_space<vmem>>, vector<1x8x1xf32>,
    %c1_62 = arith.constant 1 : index
    %c0_63 = arith.constant 0 : index
    %c0_64 = arith.constant 0 : index
    %77 = vector.load %arg13[%c1_62, %c0_63, %c0_64] : memref<4x8x8xf32, #tpu.memory_space<vmem>>, vector<1x8x8xf32>
    %78 = vector.shape_cast %77 : vector<1x8x8xf32> to vector<8x8xf32>
    %79 = vector.broadcast %64 : vector<8x1xf32> to vector<8x8xf32>
    %80 = arith.mulf %79, %78 : vector<8x8xf32>
    %cst_65 = arith.constant dense<0.000000e+00> : vector<8x8xf32>
    %81 = tpu.matmul %67, %56, %cst_65 {dimension_numbers = #tpu.dot_dimension_numbers<[1], [0], [0], [1], [0, 0, 1, 1], [], []>} : vector<8x8xf32>, vector<8x8xf32>, vector<8x8xf32> -> vector<8x8xf32>
    %82 = arith.addf %80, %81 : vector<8x8xf32>
    %c1_66 = arith.constant 1 : index
    %c0_67 = arith.constant 0 : index
    %c0_68 = arith.constant 0 : index
    %83 = vector.load %arg13[%c1_66, %c0_67, %c0_68] : memref<4x8x8xf32, #tpu.memory_space<vmem>>, vector<1x8x8xf32>
    %84 = vector.shape_cast %83 : vector<1x8x8xf32> to vector<8x8xf32>
    %85 = vector.shape_cast %82 : vector<8x8xf32> to vector<1x8x8xf32>
    tpu.vector_store %arg13[%c1_66, %c0_67, %c0_68], %85 {strides = array<i32>} : memref<4x8x8xf32, #tpu.memory_space<vmem>>, vector<1x8x8xf32>,
    %c1_69 = arith.constant 1 : index
    %c0_70 = arith.constant 0 : index
    %c0_71 = arith.constant 0 : index
    %86 = vector.load %arg11[%c1_69, %c0_70, %c0_71] : memref<4x8x1xf32, #tpu.memory_space<vmem>>, vector<1x8x1xf32>
    %87 = vector.shape_cast %86 : vector<1x8x1xf32> to vector<8x1xf32>
    %88 = vector.shape_cast %62 : vector<8x1xf32> to vector<1x8x1xf32>
    tpu.vector_store %arg11[%c1_69, %c0_70, %c0_71], %88 {strides = array<i32>} : memref<4x8x1xf32, #tpu.memory_space<vmem>>, vector<1x8x1xf32>,
    %c2 = arith.constant 2 : index
    %c0_72 = arith.constant 0 : index
    %c0_73 = arith.constant 0 : index
    %89 = vector.load %arg5[%c2, %c0_72, %c0_73] : memref<4x32x8xf32, #tpu.memory_space<vmem>>, vector<1x32x8xf32>
    %90 = vector.shape_cast %89 : vector<1x32x8xf32> to vector<32x8xf32>
    %cst_74 = arith.constant dense<0.000000e+00> : vector<8x8xf32>
    %91 = tpu.matmul %4, %90, %cst_74 {dimension_numbers = #tpu.dot_dimension_numbers<[1], [0], [0], [1], [0, 0, 1, 1], [], []>} : vector<8x32xf32>, vector<32x8xf32>, vector<8x8xf32> -> vector<8x8xf32>
    %c2_75 = arith.constant 2 : index
    %c0_76 = arith.constant 0 : index
    %c0_77 = arith.constant 0 : index
    %92 = vector.load %arg6[%c2_75, %c0_76, %c0_77] : memref<4x32x8xf32, #tpu.memory_space<vmem>>, vector<1x32x8xf32>
    %93 = vector.shape_cast %92 : vector<1x32x8xf32> to vector<32x8xf32>
    %cst_78 = arith.constant dense<0.000000e+00> : vector<8x8xf32>
    %94 = tpu.matmul %6, %93, %cst_78 {dimension_numbers = #tpu.dot_dimension_numbers<[1], [0], [0], [1], [0, 0, 1, 1], [], []>} : vector<8x32xf32>, vector<32x8xf32>, vector<8x8xf32> -> vector<8x8xf32>
    %c2_79 = arith.constant 2 : index
    %c0_80 = arith.constant 0 : index
    %c0_81 = arith.constant 0 : index
    %95 = vector.load %arg7[%c2_79, %c0_80, %c0_81] : memref<4x32x8xf32, #tpu.memory_space<vmem>>, vector<1x32x8xf32>
    %96 = vector.shape_cast %95 : vector<1x32x8xf32> to vector<32x8xf32>
    %cst_82 = arith.constant dense<0.000000e+00> : vector<8x8xf32>
    %97 = tpu.matmul %6, %96, %cst_82 {dimension_numbers = #tpu.dot_dimension_numbers<[1], [0], [0], [1], [0, 0, 1, 1], [], []>} : vector<8x32xf32>, vector<32x8xf32>, vector<8x8xf32> -> vector<8x8xf32>
    %cst_83 = arith.constant dense<0.000000e+00> : vector<8x8xf32>
    %98 = tpu.matmul %91, %94, %cst_83 {dimension_numbers = #tpu.dot_dimension_numbers<[1], [1], [0], [0], [0, 0, 1, 0], [], []>} : vector<8x8xf32>, vector<8x8xf32>, vector<8x8xf32> -> vector<8x8xf32>
    %c2_84 = arith.constant 2 : index
    %c0_85 = arith.constant 0 : index
    %c0_86 = arith.constant 0 : index
    %99 = vector.load %arg11[%c2_84, %c0_85, %c0_86] : memref<4x8x1xf32, #tpu.memory_space<vmem>>, vector<1x8x1xf32>
    %100 = vector.shape_cast %99 : vector<1x8x1xf32> to vector<8x1xf32>
    %cst_87 = arith.constant dense<0xFF800000> : vector<8xf32>
    %101 = vector.multi_reduction <maximumf>, %98, %cst_87 [1] : vector<8x8xf32> to vector<8xf32>
    %102 = vector.shape_cast %101 : vector<8xf32> to vector<8x1xf32>
    %103 = arith.maximumf %100, %102 : vector<8x1xf32>
    %104 = arith.subf %100, %103 : vector<8x1xf32>
    %105 = math.exp %104 : vector<8x1xf32>
    %106 = vector.broadcast %103 : vector<8x1xf32> to vector<8x8xf32>
    %107 = arith.subf %98, %106 : vector<8x8xf32>
    %108 = math.exp %107 : vector<8x8xf32>
    %c2_88 = arith.constant 2 : index
    %c0_89 = arith.constant 0 : index
    %c0_90 = arith.constant 0 : index
    %109 = vector.load %arg12[%c2_88, %c0_89, %c0_90] : memref<4x8x1xf32, #tpu.memory_space<vmem>>, vector<1x8x1xf32>
    %110 = vector.shape_cast %109 : vector<1x8x1xf32> to vector<8x1xf32>
    %111 = arith.mulf %105, %110 : vector<8x1xf32>
    %cst_91 = arith.constant dense<0.000000e+00> : vector<8xf32>
    %112 = vector.multi_reduction <add>, %108, %cst_91 [1] : vector<8x8xf32> to vector<8xf32>
    %113 = vector.shape_cast %112 : vector<8xf32> to vector<8x1xf32>
    %114 = arith.addf %111, %113 : vector<8x1xf32>
    %c2_92 = arith.constant 2 : index
    %c0_93 = arith.constant 0 : index
    %c0_94 = arith.constant 0 : index
    %115 = vector.load %arg12[%c2_92, %c0_93, %c0_94] : memref<4x8x1xf32, #tpu.memory_space<vmem>>, vector<1x8x1xf32>
    %116 = vector.shape_cast %115 : vector<1x8x1xf32> to vector<8x1xf32>
    %117 = vector.shape_cast %114 : vector<8x1xf32> to vector<1x8x1xf32>
    tpu.vector_store %arg12[%c2_92, %c0_93, %c0_94], %117 {strides = array<i32>} : memref<4x8x1xf32, #tpu.memory_space<vmem>>, vector<1x8x1xf32>,
    %c2_95 = arith.constant 2 : index
    %c0_96 = arith.constant 0 : index
    %c0_97 = arith.constant 0 : index
    %118 = vector.load %arg13[%c2_95, %c0_96, %c0_97] : memref<4x8x8xf32, #tpu.memory_space<vmem>>, vector<1x8x8xf32>
    %119 = vector.shape_cast %118 : vector<1x8x8xf32> to vector<8x8xf32>
    %120 = vector.broadcast %105 : vector<8x1xf32> to vector<8x8xf32>
    %121 = arith.mulf %120, %119 : vector<8x8xf32>
    %cst_98 = arith.constant dense<0.000000e+00> : vector<8x8xf32>
    %122 = tpu.matmul %108, %97, %cst_98 {dimension_numbers = #tpu.dot_dimension_numbers<[1], [0], [0], [1], [0, 0, 1, 1], [], []>} : vector<8x8xf32>, vector<8x8xf32>, vector<8x8xf32> -> vector<8x8xf32>
    %123 = arith.addf %121, %122 : vector<8x8xf32>
    %c2_99 = arith.constant 2 : index
    %c0_100 = arith.constant 0 : index
    %c0_101 = arith.constant 0 : index
    %124 = vector.load %arg13[%c2_99, %c0_100, %c0_101] : memref<4x8x8xf32, #tpu.memory_space<vmem>>, vector<1x8x8xf32>
    %125 = vector.shape_cast %124 : vector<1x8x8xf32> to vector<8x8xf32>
    %126 = vector.shape_cast %123 : vector<8x8xf32> to vector<1x8x8xf32>
    tpu.vector_store %arg13[%c2_99, %c0_100, %c0_101], %126 {strides = array<i32>} : memref<4x8x8xf32, #tpu.memory_space<vmem>>, vector<1x8x8xf32>,
    %c2_102 = arith.constant 2 : index
    %c0_103 = arith.constant 0 : index
    %c0_104 = arith.constant 0 : index
    %127 = vector.load %arg11[%c2_102, %c0_103, %c0_104] : memref<4x8x1xf32, #tpu.memory_space<vmem>>, vector<1x8x1xf32>
    %128 = vector.shape_cast %127 : vector<1x8x1xf32> to vector<8x1xf32>
    %129 = vector.shape_cast %103 : vector<8x1xf32> to vector<1x8x1xf32>
    tpu.vector_store %arg11[%c2_102, %c0_103, %c0_104], %129 {strides = array<i32>} : memref<4x8x1xf32, #tpu.memory_space<vmem>>, vector<1x8x1xf32>,
    %c3 = arith.constant 3 : index
    %c0_105 = arith.constant 0 : index
    %c0_106 = arith.constant 0 : index
    %130 = vector.load %arg5[%c3, %c0_105, %c0_106] : memref<4x32x8xf32, #tpu.memory_space<vmem>>, vector<1x32x8xf32>
    %131 = vector.shape_cast %130 : vector<1x32x8xf32> to vector<32x8xf32>
    %cst_107 = arith.constant dense<0.000000e+00> : vector<8x8xf32>
    %132 = tpu.matmul %4, %131, %cst_107 {dimension_numbers = #tpu.dot_dimension_numbers<[1], [0], [0], [1], [0, 0, 1, 1], [], []>} : vector<8x32xf32>, vector<32x8xf32>, vector<8x8xf32> -> vector<8x8xf32>
    %c3_108 = arith.constant 3 : index
    %c0_109 = arith.constant 0 : index
    %c0_110 = arith.constant 0 : index
    %133 = vector.load %arg6[%c3_108, %c0_109, %c0_110] : memref<4x32x8xf32, #tpu.memory_space<vmem>>, vector<1x32x8xf32>
    %134 = vector.shape_cast %133 : vector<1x32x8xf32> to vector<32x8xf32>
    %cst_111 = arith.constant dense<0.000000e+00> : vector<8x8xf32>
    %135 = tpu.matmul %6, %134, %cst_111 {dimension_numbers = #tpu.dot_dimension_numbers<[1], [0], [0], [1], [0, 0, 1, 1], [], []>} : vector<8x32xf32>, vector<32x8xf32>, vector<8x8xf32> -> vector<8x8xf32>
    %c3_112 = arith.constant 3 : index
    %c0_113 = arith.constant 0 : index
    %c0_114 = arith.constant 0 : index
    %136 = vector.load %arg7[%c3_112, %c0_113, %c0_114] : memref<4x32x8xf32, #tpu.memory_space<vmem>>, vector<1x32x8xf32>
    %137 = vector.shape_cast %136 : vector<1x32x8xf32> to vector<32x8xf32>
    %cst_115 = arith.constant dense<0.000000e+00> : vector<8x8xf32>
    %138 = tpu.matmul %6, %137, %cst_115 {dimension_numbers = #tpu.dot_dimension_numbers<[1], [0], [0], [1], [0, 0, 1, 1], [], []>} : vector<8x32xf32>, vector<32x8xf32>, vector<8x8xf32> -> vector<8x8xf32>
    %cst_116 = arith.constant dense<0.000000e+00> : vector<8x8xf32>
    %139 = tpu.matmul %132, %135, %cst_116 {dimension_numbers = #tpu.dot_dimension_numbers<[1], [1], [0], [0], [0, 0, 1, 0], [], []>} : vector<8x8xf32>, vector<8x8xf32>, vector<8x8xf32> -> vector<8x8xf32>
    %c3_117 = arith.constant 3 : index
    %c0_118 = arith.constant 0 : index
    %c0_119 = arith.constant 0 : index
    %140 = vector.load %arg11[%c3_117, %c0_118, %c0_119] : memref<4x8x1xf32, #tpu.memory_space<vmem>>, vector<1x8x1xf32>
    %141 = vector.shape_cast %140 : vector<1x8x1xf32> to vector<8x1xf32>
    %cst_120 = arith.constant dense<0xFF800000> : vector<8xf32>
    %142 = vector.multi_reduction <maximumf>, %139, %cst_120 [1] : vector<8x8xf32> to vector<8xf32>
    %143 = vector.shape_cast %142 : vector<8xf32> to vector<8x1xf32>
    %144 = arith.maximumf %141, %143 : vector<8x1xf32>
    %145 = arith.subf %141, %144 : vector<8x1xf32>
    %146 = math.exp %145 : vector<8x1xf32>
    %147 = vector.broadcast %144 : vector<8x1xf32> to vector<8x8xf32>
    %148 = arith.subf %139, %147 : vector<8x8xf32>
    %149 = math.exp %148 : vector<8x8xf32>
    %c3_121 = arith.constant 3 : index
    %c0_122 = arith.constant 0 : index
    %c0_123 = arith.constant 0 : index
    %150 = vector.load %arg12[%c3_121, %c0_122, %c0_123] : memref<4x8x1xf32, #tpu.memory_space<vmem>>, vector<1x8x1xf32>
    %151 = vector.shape_cast %150 : vector<1x8x1xf32> to vector<8x1xf32>
    %152 = arith.mulf %146, %151 : vector<8x1xf32>
    %cst_124 = arith.constant dense<0.000000e+00> : vector<8xf32>
    %153 = vector.multi_reduction <add>, %149, %cst_124 [1] : vector<8x8xf32> to vector<8xf32>
    %154 = vector.shape_cast %153 : vector<8xf32> to vector<8x1xf32>
    %155 = arith.addf %152, %154 : vector<8x1xf32>
    %c3_125 = arith.constant 3 : index
    %c0_126 = arith.constant 0 : index
    %c0_127 = arith.constant 0 : index
    %156 = vector.load %arg12[%c3_125, %c0_126, %c0_127] : memref<4x8x1xf32, #tpu.memory_space<vmem>>, vector<1x8x1xf32>
    %157 = vector.shape_cast %156 : vector<1x8x1xf32> to vector<8x1xf32>
    %158 = vector.shape_cast %155 : vector<8x1xf32> to vector<1x8x1xf32>
    tpu.vector_store %arg12[%c3_125, %c0_126, %c0_127], %158 {strides = array<i32>} : memref<4x8x1xf32, #tpu.memory_space<vmem>>, vector<1x8x1xf32>,
    %c3_128 = arith.constant 3 : index
    %c0_129 = arith.constant 0 : index
    %c0_130 = arith.constant 0 : index
    %159 = vector.load %arg13[%c3_128, %c0_129, %c0_130] : memref<4x8x8xf32, #tpu.memory_space<vmem>>, vector<1x8x8xf32>
    %160 = vector.shape_cast %159 : vector<1x8x8xf32> to vector<8x8xf32>
    %161 = vector.broadcast %146 : vector<8x1xf32> to vector<8x8xf32>
    %162 = arith.mulf %161, %160 : vector<8x8xf32>
    %cst_131 = arith.constant dense<0.000000e+00> : vector<8x8xf32>
    %163 = tpu.matmul %149, %138, %cst_131 {dimension_numbers = #tpu.dot_dimension_numbers<[1], [0], [0], [1], [0, 0, 1, 1], [], []>} : vector<8x8xf32>, vector<8x8xf32>, vector<8x8xf32> -> vector<8x8xf32>
    %164 = arith.addf %162, %163 : vector<8x8xf32>
    %c3_132 = arith.constant 3 : index
    %c0_133 = arith.constant 0 : index
    %c0_134 = arith.constant 0 : index
    %165 = vector.load %arg13[%c3_132, %c0_133, %c0_134] : memref<4x8x8xf32, #tpu.memory_space<vmem>>, vector<1x8x8xf32>
    %166 = vector.shape_cast %165 : vector<1x8x8xf32> to vector<8x8xf32>
    %167 = vector.shape_cast %164 : vector<8x8xf32> to vector<1x8x8xf32>
    tpu.vector_store %arg13[%c3_132, %c0_133, %c0_134], %167 {strides = array<i32>} : memref<4x8x8xf32, #tpu.memory_space<vmem>>, vector<1x8x8xf32>,
    %c3_135 = arith.constant 3 : index
    %c0_136 = arith.constant 0 : index
    %c0_137 = arith.constant 0 : index
    %168 = vector.load %arg11[%c3_135, %c0_136, %c0_137] : memref<4x8x1xf32, #tpu.memory_space<vmem>>, vector<1x8x1xf32>
    %169 = vector.shape_cast %168 : vector<1x8x1xf32> to vector<8x1xf32>
    %170 = vector.shape_cast %144 : vector<8x1xf32> to vector<1x8x1xf32>
    tpu.vector_store %arg11[%c3_135, %c0_136, %c0_137], %170 {strides = array<i32>} : memref<4x8x1xf32, #tpu.memory_space<vmem>>, vector<1x8x1xf32>,
    %c0_i32_138 = arith.constant 0 : i32
    %171 = arith.cmpi eq, %arg2, %c0_i32_138 : i32
    %172 = arith.extui %171 : i1 to i32
    %c0_i32_139 = arith.constant 0 : i32
    %173 = arith.cmpi ne, %172, %c0_i32_139 : i32
    scf.if %173 {
      %cst_140 = arith.constant 0.000000e+00 : f32
      %174 = vector.broadcast %cst_140 : f32 to vector<8x32xf32>
      %c0_141 = arith.constant 0 : index
      %c0_142 = arith.constant 0 : index
      %c0_143 = arith.constant 0 : index
      %175 = vector.load %arg13[%c0_141, %c0_142, %c0_143] : memref<4x8x8xf32, #tpu.memory_space<vmem>>, vector<1x8x8xf32>
      %176 = vector.shape_cast %175 : vector<1x8x8xf32> to vector<8x8xf32>
      %c0_144 = arith.constant 0 : index
      %c0_145 = arith.constant 0 : index
      %c0_146 = arith.constant 0 : index
      %177 = vector.load %arg12[%c0_144, %c0_145, %c0_146] : memref<4x8x1xf32, #tpu.memory_space<vmem>>, vector<1x8x1xf32>
      %178 = vector.shape_cast %177 : vector<1x8x1xf32> to vector<8x1xf32>
      %179 = vector.broadcast %178 : vector<8x1xf32> to vector<8x8xf32>
      %180 = arith.divf %176, %179 : vector<8x8xf32>
      %c0_147 = arith.constant 0 : index
      %c0_148 = arith.constant 0 : index
      %c0_149 = arith.constant 0 : index
      %181 = vector.load %arg8[%c0_147, %c0_148, %c0_149] : memref<4x8x32xf32, #tpu.memory_space<vmem>>, vector<1x8x32xf32>
      %182 = vector.shape_cast %181 : vector<1x8x32xf32> to vector<8x32xf32>
      %cst_150 = arith.constant dense<0.000000e+00> : vector<8x32xf32>
      %183 = tpu.matmul %180, %182, %cst_150 {dimension_numbers = #tpu.dot_dimension_numbers<[1], [0], [0], [1], [0, 0, 1, 1], [], []>} : vector<8x8xf32>, vector<8x32xf32>, vector<8x32xf32> -> vector<8x32xf32>
      %184 = arith.addf %174, %183 : vector<8x32xf32>
      %c1_151 = arith.constant 1 : index
      %c0_152 = arith.constant 0 : index
      %c0_153 = arith.constant 0 : index
      %185 = vector.load %arg13[%c1_151, %c0_152, %c0_153] : memref<4x8x8xf32, #tpu.memory_space<vmem>>, vector<1x8x8xf32>
      %186 = vector.shape_cast %185 : vector<1x8x8xf32> to vector<8x8xf32>
      %c1_154 = arith.constant 1 : index
      %c0_155 = arith.constant 0 : index
      %c0_156 = arith.constant 0 : index
      %187 = vector.load %arg12[%c1_154, %c0_155, %c0_156] : memref<4x8x1xf32, #tpu.memory_space<vmem>>, vector<1x8x1xf32>
      %188 = vector.shape_cast %187 : vector<1x8x1xf32> to vector<8x1xf32>
      %189 = vector.broadcast %188 : vector<8x1xf32> to vector<8x8xf32>
      %190 = arith.divf %186, %189 : vector<8x8xf32>
      %c1_157 = arith.constant 1 : index
      %c0_158 = arith.constant 0 : index
      %c0_159 = arith.constant 0 : index
      %191 = vector.load %arg8[%c1_157, %c0_158, %c0_159] : memref<4x8x32xf32, #tpu.memory_space<vmem>>, vector<1x8x32xf32>
      %192 = vector.shape_cast %191 : vector<1x8x32xf32> to vector<8x32xf32>
      %cst_160 = arith.constant dense<0.000000e+00> : vector<8x32xf32>
      %193 = tpu.matmul %190, %192, %cst_160 {dimension_numbers = #tpu.dot_dimension_numbers<[1], [0], [0], [1], [0, 0, 1, 1], [], []>} : vector<8x8xf32>, vector<8x32xf32>, vector<8x32xf32> -> vector<8x32xf32>
      %194 = arith.addf %184, %193 : vector<8x32xf32>
      %c2_161 = arith.constant 2 : index
      %c0_162 = arith.constant 0 : index
      %c0_163 = arith.constant 0 : index
      %195 = vector.load %arg13[%c2_161, %c0_162, %c0_163] : memref<4x8x8xf32, #tpu.memory_space<vmem>>, vector<1x8x8xf32>
      %196 = vector.shape_cast %195 : vector<1x8x8xf32> to vector<8x8xf32>
      %c2_164 = arith.constant 2 : index
      %c0_165 = arith.constant 0 : index
      %c0_166 = arith.constant 0 : index
      %197 = vector.load %arg12[%c2_164, %c0_165, %c0_166] : memref<4x8x1xf32, #tpu.memory_space<vmem>>, vector<1x8x1xf32>
      %198 = vector.shape_cast %197 : vector<1x8x1xf32> to vector<8x1xf32>
      %199 = vector.broadcast %198 : vector<8x1xf32> to vector<8x8xf32>
      %200 = arith.divf %196, %199 : vector<8x8xf32>
      %c2_167 = arith.constant 2 : index
      %c0_168 = arith.constant 0 : index
      %c0_169 = arith.constant 0 : index
      %201 = vector.load %arg8[%c2_167, %c0_168, %c0_169] : memref<4x8x32xf32, #tpu.memory_space<vmem>>, vector<1x8x32xf32>
      %202 = vector.shape_cast %201 : vector<1x8x32xf32> to vector<8x32xf32>
      %cst_170 = arith.constant dense<0.000000e+00> : vector<8x32xf32>
      %203 = tpu.matmul %200, %202, %cst_170 {dimension_numbers = #tpu.dot_dimension_numbers<[1], [0], [0], [1], [0, 0, 1, 1], [], []>} : vector<8x8xf32>, vector<8x32xf32>, vector<8x32xf32> -> vector<8x32xf32>
      %204 = arith.addf %194, %203 : vector<8x32xf32>
      %c3_171 = arith.constant 3 : index
      %c0_172 = arith.constant 0 : index
      %c0_173 = arith.constant 0 : index
      %205 = vector.load %arg13[%c3_171, %c0_172, %c0_173] : memref<4x8x8xf32, #tpu.memory_space<vmem>>, vector<1x8x8xf32>
      %206 = vector.shape_cast %205 : vector<1x8x8xf32> to vector<8x8xf32>
      %c3_174 = arith.constant 3 : index
      %c0_175 = arith.constant 0 : index
      %c0_176 = arith.constant 0 : index
      %207 = vector.load %arg12[%c3_174, %c0_175, %c0_176] : memref<4x8x1xf32, #tpu.memory_space<vmem>>, vector<1x8x1xf32>
      %208 = vector.shape_cast %207 : vector<1x8x1xf32> to vector<8x1xf32>
      %209 = vector.broadcast %208 : vector<8x1xf32> to vector<8x8xf32>
      %210 = arith.divf %206, %209 : vector<8x8xf32>
      %c3_177 = arith.constant 3 : index
      %c0_178 = arith.constant 0 : index
      %c0_179 = arith.constant 0 : index
      %211 = vector.load %arg8[%c3_177, %c0_178, %c0_179] : memref<4x8x32xf32, #tpu.memory_space<vmem>>, vector<1x8x32xf32>
      %212 = vector.shape_cast %211 : vector<1x8x32xf32> to vector<8x32xf32>
      %cst_180 = arith.constant dense<0.000000e+00> : vector<8x32xf32>
      %213 = tpu.matmul %210, %212, %cst_180 {dimension_numbers = #tpu.dot_dimension_numbers<[1], [0], [0], [1], [0, 0, 1, 1], [], []>} : vector<8x8xf32>, vector<8x32xf32>, vector<8x32xf32> -> vector<8x32xf32>
      %214 = arith.addf %204, %213 : vector<8x32xf32>
      %c0_181 = arith.constant 0 : index
      %c0_182 = arith.constant 0 : index
      %215 = vector.load %arg9[%c0_181, %c0_182] : memref<1x32xf32, #tpu.memory_space<vmem>>, vector<1x32xf32>
      %216 = vector.broadcast %215 : vector<1x32xf32> to vector<8x32xf32>
      %217 = arith.addf %214, %216 : vector<8x32xf32>
      %c0_183 = arith.constant 0 : index
      %c0_184 = arith.constant 0 : index
      %c0_185 = arith.constant 0 : index
      %218 = vector.load %arg10[%c0_183, %c0_184, %c0_185] : memref<1x8x32xf32, #tpu.memory_space<vmem>>, vector<1x8x32xf32>
      %219 = vector.shape_cast %218 : vector<1x8x32xf32> to vector<8x32xf32>
      %220 = vector.shape_cast %217 : vector<8x32xf32> to vector<1x8x32xf32>
      tpu.vector_store %arg10[%c0_183, %c0_184, %c0_185], %220 {strides = array<i32>} : memref<1x8x32xf32, #tpu.memory_space<vmem>>, vector<1x8x32xf32>,
    } else {
    }
    return
  }
  func.func @transform_0(%arg0: i32, %arg1: i32, %arg2: i32) -> (i32, i32, i32) {
    %c0_i32 = arith.constant 0 : i32
    %c0_i32_0 = arith.constant 0 : i32
    return %arg0, %arg1, %c0_i32 : i32, i32, i32
  }
  func.func @transform_1(%arg0: i32, %arg1: i32, %arg2: i32) -> (i32, i32, i32) {
    %c0_i32 = arith.constant 0 : i32
    %c0_i32_0 = arith.constant 0 : i32
    return %arg0, %arg2, %c0_i32 : i32, i32, i32
  }
  func.func @transform_2(%arg0: i32, %arg1: i32, %arg2: i32) -> (i32, i32, i32) {
    %c0_i32 = arith.constant 0 : i32
    %c0_i32_0 = arith.constant 0 : i32
    %c0_i32_1 = arith.constant 0 : i32
    %c0_i32_2 = arith.constant 0 : i32
    return %c0_i32, %c0_i32_0, %c0_i32_1 : i32, i32, i32
  }
  func.func @transform_3(%arg0: i32, %arg1: i32, %arg2: i32) -> (i32, i32, i32) {
    %c0_i32 = arith.constant 0 : i32
    %c0_i32_0 = arith.constant 0 : i32
    %c0_i32_1 = arith.constant 0 : i32
    %c0_i32_2 = arith.constant 0 : i32
    return %c0_i32, %c0_i32_0, %c0_i32_1 : i32, i32, i32
  }
  func.func @transform_4(%arg0: i32, %arg1: i32, %arg2: i32) -> (i32, i32, i32) {
    %c0_i32 = arith.constant 0 : i32
    %c0_i32_0 = arith.constant 0 : i32
    %c0_i32_1 = arith.constant 0 : i32
    %c0_i32_2 = arith.constant 0 : i32
    return %c0_i32, %c0_i32_0, %c0_i32_1 : i32, i32, i32
  }
  func.func @transform_5(%arg0: i32, %arg1: i32, %arg2: i32) -> (i32, i32, i32) {
    %c0_i32 = arith.constant 0 : i32
    %c0_i32_0 = arith.constant 0 : i32
    %c0_i32_1 = arith.constant 0 : i32
    %c0_i32_2 = arith.constant 0 : i32
    return %c0_i32, %c0_i32_0, %c0_i32_1 : i32, i32, i32
  }
  func.func @transform_6(%arg0: i32, %arg1: i32, %arg2: i32) -> (i32, i32) {
    %c0_i32 = arith.constant 0 : i32
    %c0_i32_0 = arith.constant 0 : i32
    %c0_i32_1 = arith.constant 0 : i32
    return %c0_i32, %c0_i32_0 : i32, i32
  }
  func.func @transform_7(%arg0: i32, %arg1: i32, %arg2: i32) -> (i32, i32, i32) {
    %c0_i32 = arith.constant 0 : i32
    %c0_i32_0 = arith.constant 0 : i32
    return %arg0, %arg1, %c0_i32 : i32, i32, i32
  }
}

</mosaic_0001>

<llo_original>
// kernel: tpu_custom_call.1
$region0: #{tpu_custom_call.1}
  #allocation0 [shape = 'u32[]', space=smem, size = 0x4, offset = 0x4, fixed_abs, tag = 'smem constant byte address 0x4 - core index']
  #allocation1 [shape = 'u32[72,128]{1,0:T(1,128)}', space=vmem, size = 0x9000, scoped, tag = 'internal scratch']
  #allocation2 [shape = 'f32[4,8,1]{2,1,0:T(8,128)}', space=vmem, size = 0x4000, scoped, tag = 'scratch operand']
  #allocation3 [shape = 'f32[4,8,1]{2,1,0:T(8,128)}', space=vmem, size = 0x4000, scoped, tag = 'scratch operand']
  #allocation4 [shape = 'f32[4,8,8]{2,1,0:T(8,128)}', space=vmem, size = 0x4000, scoped, tag = 'scratch operand']
  %s0 = inlined_call_operand.vmem [shape: f32[2,8,32], index: 0, kind: input, shape index: {}]
  %s1 = inlined_call_operand.vmem [shape: f32[2,8,32], index: 1, kind: input, shape index: {}]
  %s2 = inlined_call_operand.vmem [shape: f32[4,32,8], index: 2, kind: input, shape index: {}]
  %s3 = inlined_call_operand.vmem [shape: f32[4,32,8], index: 3, kind: input, shape index: {}]
  %s4 = inlined_call_operand.vmem [shape: f32[4,32,8], index: 4, kind: input, shape index: {}]
  %s5 = inlined_call_operand.vmem [shape: f32[4,8,32], index: 5, kind: input, shape index: {}]
  %s6 = inlined_call_operand.vmem [shape: f32[1,32], index: 6, kind: input, shape index: {}]
  %s7 = inlined_call_operand.hbm [shape: f32[2,8,32], index: 7, kind: output, shape index: {}]
  %s8 = sld [smem:[#allocation0]]
  $region69: #{tpu_custom_call.1} parent=0
    _
  %s10 = ssub.s32 1, %s8
  %s11 = scalar_select 0, %s10, %s8
  $region1: #{tpu_custom_call.1} parent=0
    #allocation5 [shape = 'u8[8192]{0}', space=vmem, size = 0x2000, scoped, tag = 'output window, operand 0']
    #allocation6 [shape = 's32[2]{0}', space=sflag, size = 0x8, scoped, tag = 'scoped memory for tpu_custom_call.1']
    %12 = vsyncpa [#allocation6], 0
    %s13 = scalar_lea.sflag [#allocation6], 1
    %14 = vsyncpa %s13, 0
    loop: start=0, step=1, limit=4
    $region2: #{tpu_custom_call.1} parent=1 // loop_pre_header
      _
    $region3: #{tpu_custom_call.1} parent=1 // loop_header
      %s16 = sphi 0, %s20
      %p17 = scmp.ge.s32.totalorder %s16, 4
      %s23 = sphi 0, %s42
      %s24 = sphi 0, %s38
      %s25 = sphi 0, %s34
      %s26 = sphi 0, %s23
      %s27 = sphi 0, %s24
      %s28 = sphi 0, %s25
      %s29 = sphi 0, %s26
      %s30 = sphi 0, %s27
      %s31 = sphi 0, %s28
      %s47 = sphi 0, %s49
      %s50 = sphi 0, %s47
      %s51 = sphi 0, %s50
      %s67 = sphi 0, %s51
      %s75 = sphi 0, %s77
      %s78 = sphi 0, %s75
      %s79 = sphi 0, %s78
      %s95 = sphi 0, %s79
      %s99 = sphi 0, %s99
      %s101 = sphi 0, %s99
      %s102 = sphi 0, %s101
      %s116 = sphi 0, %s102
      %s120 = sphi 0, %s120
      %s122 = sphi 0, %s120
      %s123 = sphi 0, %s122
      %s137 = sphi 0, %s123
      %s141 = sphi 0, %s141
      %s143 = sphi 0, %s141
      %s144 = sphi 0, %s143
      %s158 = sphi 0, %s144
      %s162 = sphi 0, %s162
      %s164 = sphi 0, %s162
      %s165 = sphi 0, %s164
      %s179 = sphi 0, %s165
      %s183 = sphi 0, %s183
      %s185 = sphi 0, %s183
      %s186 = sphi 0, %s185
      %s200 = sphi 0, %s186
      %s208 = sphi 0, %s210
      %s211 = sphi 0, %s208
      %s212 = sphi 0, %s211
      %s228 = sphi 0, %s212
    $region4: #{tpu_custom_call.1} parent=1 // loop_header_branch
      %19 = sbr.rel (%p17) target = $region8
    $region5: #{tpu_custom_call.1} parent=1 // loop_body
      %s21 = ssub.s32 %s16, 1
      %s22 = ssub.s32 %s16, 2
      %s32 = sadd.s32 1, %s25
      %p33 = scmp.ge.s32.totalorder %s32, 1
      %s34 = scalar_select %p33, 0, %s32
      %s35 = sadd.s32 1, %s24
      %s36 = scalar_select %p33, %s35, %s24
      %p37 = scmp.ge.s32.totalorder %s36, 1
      %s38 = scalar_select %p37, 0, %s36
      %s39 = sadd.s32 1, %s23
      %s40 = scalar_select %p37, %s39, %s23
      %p41 = scmp.ge.s32.totalorder %s40, 2
      %s42 = scalar_select %p41, 0, %s40
      %s43 = ssub.s32 %s23, %s42
      %s44 = ssub.s32 %s24, %s38
      %s45 = sor.u32 %s43, %s44
      %p46 = scmp.eq.s32.totalorder %s45, 0
      %s48 = sadd.s32 %s47, 1
      %s49 = scalar_select %p46, %s47, %s48
      %p52 = pneg %p46
      %p53 = scmp.eq.s32.totalorder %s16, 1
      %p54 = por %p52, %p53
      %p55 = scmp.ne.s32.totalorder %s47, %s50
      %p56 = scmp.eq.s32.totalorder %s16, 0
      %p57 = por %p55, %p56
      %p58 = scmp.ne.s32.totalorder %s47, %s50
      %p59 = scmp.eq.s32.totalorder %s21, 1
      %p60 = por %p58, %p59
      %p61 = scmp.ne.s32.totalorder %s50, %s51
      %p62 = scmp.eq.s32.totalorder %s21, 0
      %p63 = por %p61, %p62
      %p64 = scmp.ne.s32.totalorder %s50, %s51
      %p65 = scmp.eq.s32.totalorder %s22, 1
      %p66 = por %p64, %p65
      %p68 = scmp.ne.s32.totalorder %s51, %s67
      %p69 = scmp.eq.s32.totalorder %s22, 0
      %p70 = por %p68, %p69
      %s71 = ssub.s32 %s23, %s42
      %s72 = ssub.s32 %s25, %s34
      %s73 = sor.u32 %s71, %s72
      %p74 = scmp.eq.s32.totalorder %s73, 0
      %s76 = sadd.s32 %s75, 1
      %s77 = scalar_select %p74, %s75, %s76
      %p80 = pneg %p74
      %p81 = scmp.eq.s32.totalorder %s16, 1
      %p82 = por %p80, %p81
      %p83 = scmp.ne.s32.totalorder %s75, %s78
      %p84 = scmp.eq.s32.totalorder %s16, 0
      %p85 = por %p83, %p84
      %p86 = scmp.ne.s32.totalorder %s75, %s78
      %p87 = scmp.eq.s32.totalorder %s21, 1
      %p88 = por %p86, %p87
      %p89 = scmp.ne.s32.totalorder %s78, %s79
      %p90 = scmp.eq.s32.totalorder %s21, 0
      %p91 = por %p89, %p90
      %p92 = scmp.ne.s32.totalorder %s78, %s79
      %p93 = scmp.eq.s32.totalorder %s22, 1
      %p94 = por %p92, %p93
      %p96 = scmp.ne.s32.totalorder %s79, %s95
      %p97 = scmp.eq.s32.totalorder %s22, 0
      %p98 = por %p96, %p97
      %s100 = sadd.s32 %s99, 1
      %p103 = scmp.eq.s32.totalorder %s16, 1
      %p104 = scmp.ne.s32.totalorder %s99, %s101
      %p105 = scmp.eq.s32.totalorder %s16, 0
      %p106 = por %p104, %p105
      %p107 = scmp.ne.s32.totalorder %s99, %s101
      %p108 = scmp.eq.s32.totalorder %s21, 1
      %p109 = por %p107, %p108
      %p110 = scmp.ne.s32.totalorder %s101, %s102
      %p111 = scmp.eq.s32.totalorder %s21, 0
      %p112 = por %p110, %p111
      %p113 = scmp.ne.s32.totalorder %s101, %s102
      %p114 = scmp.eq.s32.totalorder %s22, 1
      %p115 = por %p113, %p114
      %p117 = scmp.ne.s32.totalorder %s102, %s116
      %p118 = scmp.eq.s32.totalorder %s22, 0
      %p119 = por %p117, %p118
      %s121 = sadd.s32 %s120, 1
      %p124 = scmp.eq.s32.totalorder %s16, 1
      %p125 = scmp.ne.s32.totalorder %s120, %s122
      %p126 = scmp.eq.s32.totalorder %s16, 0
      %p127 = por %p125, %p126
      %p128 = scmp.ne.s32.totalorder %s120, %s122
      %p129 = scmp.eq.s32.totalorder %s21, 1
      %p130 = por %p128, %p129
      %p131 = scmp.ne.s32.totalorder %s122, %s123
      %p132 = scmp.eq.s32.totalorder %s21, 0
      %p133 = por %p131, %p132
      %p134 = scmp.ne.s32.totalorder %s122, %s123
      %p135 = scmp.eq.s32.totalorder %s22, 1
      %p136 = por %p134, %p135
      %p138 = scmp.ne.s32.totalorder %s123, %s137
      %p139 = scmp.eq.s32.totalorder %s22, 0
      %p140 = por %p138, %p139
      %s142 = sadd.s32 %s141, 1
      %p145 = scmp.eq.s32.totalorder %s16, 1
      %p146 = scmp.ne.s32.totalorder %s141, %s143
      %p147 = scmp.eq.s32.totalorder %s16, 0
      %p148 = por %p146, %p147
      %p149 = scmp.ne.s32.totalorder %s141, %s143
      %p150 = scmp.eq.s32.totalorder %s21, 1
      %p151 = por %p149, %p150
      %p152 = scmp.ne.s32.totalorder %s143, %s144
      %p153 = scmp.eq.s32.totalorder %s21, 0
      %p154 = por %p152, %p153
      %p155 = scmp.ne.s32.totalorder %s143, %s144
      %p156 = scmp.eq.s32.totalorder %s22, 1
      %p157 = por %p155, %p156
      %p159 = scmp.ne.s32.totalorder %s144, %s158
      %p160 = scmp.eq.s32.totalorder %s22, 0
      %p161 = por %p159, %p160
      %s163 = sadd.s32 %s162, 1
      %p166 = scmp.eq.s32.totalorder %s16, 1
      %p167 = scmp.ne.s32.totalorder %s162, %s164
      %p168 = scmp.eq.s32.totalorder %s16, 0
      %p169 = por %p167, %p168
      %p170 = scmp.ne.s32.totalorder %s162, %s164
      %p171 = scmp.eq.s32.totalorder %s21, 1
      %p172 = por %p170, %p171
      %p173 = scmp.ne.s32.totalorder %s164, %s165
      %p174 = scmp.eq.s32.totalorder %s21, 0
      %p175 = por %p173, %p174
      %p176 = scmp.ne.s32.totalorder %s164, %s165
      %p177 = scmp.eq.s32.totalorder %s22, 1
      %p178 = por %p176, %p177
      %p180 = scmp.ne.s32.totalorder %s165, %s179
      %p181 = scmp.eq.s32.totalorder %s22, 0
      %p182 = por %p180, %p181
      %s184 = sadd.s32 %s183, 1
      %p187 = scmp.eq.s32.totalorder %s16, 1
      %p188 = scmp.ne.s32.totalorder %s183, %s185
      %p189 = scmp.eq.s32.totalorder %s16, 0
      %p190 = por %p188, %p189
      %p191 = scmp.ne.s32.totalorder %s183, %s185
      %p192 = scmp.eq.s32.totalorder %s21, 1
      %p193 = por %p191, %p192
      %p194 = scmp.ne.s32.totalorder %s185, %s186
      %p195 = scmp.eq.s32.totalorder %s21, 0
      %p196 = por %p194, %p195
      %p197 = scmp.ne.s32.totalorder %s185, %s186
      %p198 = scmp.eq.s32.totalorder %s22, 1
      %p199 = por %p197, %p198
      %p201 = scmp.ne.s32.totalorder %s186, %s200
      %p202 = scmp.eq.s32.totalorder %s22, 0
      %p203 = por %p201, %p202
      %s204 = ssub.s32 %s23, %s42
      %s205 = ssub.s32 %s24, %s38
      %s206 = sor.u32 %s204, %s205
      %p207 = scmp.eq.s32.totalorder %s206, 0
      %s209 = sadd.s32 %s208, 1
      %s210 = scalar_select %p207, %s208, %s209
      %p213 = pneg %p207
      %p214 = scmp.eq.s32.totalorder %s16, 1
      %p215 = por %p213, %p214
      %p216 = scmp.ne.s32.totalorder %s208, %s211
      %p217 = scmp.eq.s32.totalorder %s16, 0
      %p218 = por %p216, %p217
      %p219 = scmp.ne.s32.totalorder %s208, %s211
      %p220 = scmp.eq.s32.totalorder %s21, 1
      %p221 = por %p219, %p220
      %p222 = scmp.ne.s32.totalorder %s211, %s212
      %p223 = scmp.eq.s32.totalorder %s21, 0
      %p224 = por %p222, %p223
      %p225 = scmp.ne.s32.totalorder %s211, %s212
      %p226 = scmp.eq.s32.totalorder %s22, 1
      %p227 = por %p225, %p226
      %p229 = scmp.ne.s32.totalorder %s212, %s228
      %p230 = scmp.eq.s32.totalorder %s22, 0
      %p231 = por %p229, %p230
      %p232 = scmp.le.s32.totalorder 1, %s16
      %p233 = scmp.lt.s32.totalorder %s16, 3
      %p234 = pnand %p232, %p233
      %p235 = pneg %p234
      // Predicated region
      $region9: #{tpu_custom_call.1} parent=5 // pred_check
        _
      $region10: #{tpu_custom_call.1} parent=5 // pred_check_branch
        %237 = sbr.rel (%p234) target = $region12
      $region11: #{tpu_custom_call.1} parent=5 // pred_region
        %s238 = ssub.s32 %s16, 1
        // Predicated region
        $region13: #{tpu_custom_call.1} parent=11 // pred_check
          %p239 = pneg %p112
        $region14: #{tpu_custom_call.1} parent=11 // pred_check_branch
          %241 = sbr.rel (%p239) target = $region16
        $region15: #{tpu_custom_call.1} parent=11 // pred_region
          _
        $region16: #{tpu_custom_call.1} parent=11 // pred_fallthru
          _
        // Predicated region
        $region17: #{tpu_custom_call.1} parent=11 // pred_check
          %p242 = pneg %p133
        $region18: #{tpu_custom_call.1} parent=11 // pred_check_branch
          %244 = sbr.rel (%p242) target = $region20
        $region19: #{tpu_custom_call.1} parent=11 // pred_region
          _
        $region20: #{tpu_custom_call.1} parent=11 // pred_fallthru
          _
        // Predicated region
        $region21: #{tpu_custom_call.1} parent=11 // pred_check
          %p245 = pneg %p154
        $region22: #{tpu_custom_call.1} parent=11 // pred_check_branch
          %247 = sbr.rel (%p245) target = $region24
        $region23: #{tpu_custom_call.1} parent=11 // pred_region
          _
        $region24: #{tpu_custom_call.1} parent=11 // pred_fallthru
          _
        // Predicated region
        $region25: #{tpu_custom_call.1} parent=11 // pred_check
          %p248 = pneg %p175
        $region26: #{tpu_custom_call.1} parent=11 // pred_check_branch
          %250 = sbr.rel (%p248) target = $region28
        $region27: #{tpu_custom_call.1} parent=11 // pred_region
          _
        $region28: #{tpu_custom_call.1} parent=11 // pred_fallthru
          _
        // Predicated region
        $region29: #{tpu_custom_call.1} parent=11 // pred_check
          %p251 = pneg %p196
        $region30: #{tpu_custom_call.1} parent=11 // pred_check_branch
          %253 = sbr.rel (%p251) target = $region32
        $region31: #{tpu_custom_call.1} parent=11 // pred_region
          _
        $region32: #{tpu_custom_call.1} parent=11 // pred_fallthru
          _
      $region12: #{tpu_custom_call.1} parent=5 // pred_fallthru
        _
      %p254 = scmp.lt.s32.totalorder %s16, 2
      // Predicated region
      $region33: #{tpu_custom_call.1} parent=5 // pred_check
        %p255 = pneg %p254
      $region34: #{tpu_custom_call.1} parent=5 // pred_check_branch
        %257 = sbr.rel (%p255) target = $region36
      $region35: #{tpu_custom_call.1} parent=5 // pred_region
        // Predicated region
        $region37: #{tpu_custom_call.1} parent=35 // pred_check
          %p258 = pneg %p57
        $region38: #{tpu_custom_call.1} parent=35 // pred_check_branch
          %260 = sbr.rel (%p258) target = $region40
        $region39: #{tpu_custom_call.1} parent=35 // pred_region
          %p261 = scmp.lt.s32.totalorder %s23, 1
          %s262 = scalar_select %p261, %s23, 1
          %p263 = scmp.lt.s32.totalorder %s24, 0
          %s264 = scalar_select %p263, %s24, 0
          %s265 = sadd.s32 %s264, %s262
          %s266 = smul.addr %s265, 8
          %s267 = scalar_lea.vmem %s0, %s266
        $region40: #{tpu_custom_call.1} parent=35 // pred_fallthru
          _
        // Predicated region
        $region41: #{tpu_custom_call.1} parent=35 // pred_check
          %p268 = pneg %p85
        $region42: #{tpu_custom_call.1} parent=35 // pred_check_branch
          %270 = sbr.rel (%p268) target = $region44
        $region43: #{tpu_custom_call.1} parent=35 // pred_region
          %p271 = scmp.lt.s32.totalorder %s23, 1
          %s272 = scalar_select %p271, %s23, 1
          %p273 = scmp.lt.s32.totalorder %s25, 0
          %s274 = scalar_select %p273, %s25, 0
          %s275 = sadd.s32 %s274, %s272
          %s276 = smul.addr %s275, 8
          %s277 = scalar_lea.vmem %s1, %s276
        $region44: #{tpu_custom_call.1} parent=35 // pred_fallthru
          _
      $region36: #{tpu_custom_call.1} parent=5 // pred_fallthru
        _
      %p278 = scmp.le.s32.totalorder 1, %s16
      %p279 = scmp.lt.s32.totalorder %s16, 3
      %p280 = pnand %p278, %p279
      %p281 = pneg %p280
      // Predicated region
      $region45: #{tpu_custom_call.1} parent=5 // pred_check
        _
      $region46: #{tpu_custom_call.1} parent=5 // pred_check_branch
        %283 = sbr.rel (%p280) target = $region48
      $region47: #{tpu_custom_call.1} parent=5 // pred_region
        %s284 = ssub.s32 %s16, 1
        %p285 = scmp.lt.s32.totalorder %s26, 1
        %s286 = scalar_select %p285, %s26, 1
        %p287 = scmp.lt.s32.totalorder %s27, 0
        %s288 = scalar_select %p287, %s27, 0
        %s289 = sadd.s32 %s288, %s286
        %s290 = smul.addr %s289, 8
        %s291 = scalar_lea.vmem %s0, %s290
        %p292 = pneg %p63
        %p293 = pneg %p60
        %p294 = scmp.lt.s32.totalorder %s26, 1
        %s295 = scalar_select %p294, %s26, 1
        %p296 = scmp.lt.s32.totalorder %s28, 0
        %s297 = scalar_select %p296, %s28, 0
        %s298 = sadd.s32 %s297, %s295
        %s299 = smul.addr %s298, 8
        %s300 = scalar_lea.vmem %s1, %s299
        %p301 = pneg %p91
        %p302 = pneg %p88
        %p303 = pneg %p112
        %p304 = pneg %p109
        %p305 = pneg %p133
        %p306 = pneg %p130
        %p307 = pneg %p154
        %p308 = pneg %p151
        %p309 = pneg %p175
        %p310 = pneg %p172
        %p311 = pneg %p196
        %p312 = pneg %p193
        %p313 = pneg %p224
        %p314 = pneg %p221
        %s315 = sand.u32 %s211, 1
        %s316 = scalar_lea.sflag [#allocation6], %s315
        %s317 = sand.u32 %s211, 1
        %s318 = smul.addr %s317, 8
        %s319 = scalar_lea.vmem [#allocation5], %s318
        %p320 = scmp.lt.s32.totalorder %s26, 1
        %s321 = scalar_select %p320, %s26, 1
        %p322 = scmp.lt.s32.totalorder %s27, 0
        %s323 = scalar_select %p322, %s27, 0
        %s324 = sadd.s32 %s323, %s321
        %s325 = smul.addr %s324, 8
        %s326 = scalar_lea.vmem %s0, %s325
        %p327 = scmp.lt.s32.totalorder %s26, 1
        %s328 = scalar_select %p327, %s26, 1
        %p329 = scmp.lt.s32.totalorder %s28, 0
        %s330 = scalar_select %p329, %s28, 0
        %s331 = sadd.s32 %s330, %s328
        %s332 = smul.addr %s331, 8
        %s333 = scalar_lea.vmem %s1, %s332
        %p334 = scmp.eq.s32.totalorder %s28, 0
        // Predicated region
        $region49: #{tpu_custom_call.1} parent=47 // pred_check
          %p335 = pneg %p334
        $region50: #{tpu_custom_call.1} parent=47 // pred_check_branch
          %337 = sbr.rel (%p335) target = $region52
        $region51: #{tpu_custom_call.1} parent=47 // pred_region
          %vm338 = vcmask 7168
          %339 = vst.msk [vmem:[#allocation2] sm:$0xff] %vm338, -inf
          %340 = vst.msk [vmem:[#allocation2 + $0x8] sm:$0xff] %vm338, -inf
          %341 = vst.msk [vmem:[#allocation2 + $0x10] sm:$0xff] %vm338, -inf
          %342 = vst.msk [vmem:[#allocation2 + $0x18] sm:$0xff] %vm338, -inf
          %343 = vst.msk [vmem:[#allocation3] sm:$0xff] %vm338, 0.0
          %344 = vst.msk [vmem:[#allocation3 + $0x8] sm:$0xff] %vm338, 0.0
          %345 = vst.msk [vmem:[#allocation3 + $0x10] sm:$0xff] %vm338, 0.0
          %346 = vst.msk [vmem:[#allocation3 + $0x18] sm:$0xff] %vm338, 0.0
          %vm347 = vcmask 64512
          %348 = vst.msk [vmem:[#allocation4] sm:$0xff] %vm347, 0.0
          %349 = vst.msk [vmem:[#allocation4 + $0x8] sm:$0xff] %vm347, 0.0
          %350 = vst.msk [vmem:[#allocation4 + $0x10] sm:$0xff] %vm347, 0.0
          %351 = vst.msk [vmem:[#allocation4 + $0x18] sm:$0xff] %vm347, 0.0
        $region52: #{tpu_custom_call.1} parent=47 // pred_fallthru
          _
        %v352 = vld [vmem:[%s326] sm:$0xff]
        %v353 = vld [vmem:[%s333] sm:$0xff]
        %v354 = vld [vmem:[%s2] sm:$0xff]
        %v355 = vld [vmem:[%s2 + $0x8] sm:$0xff]
        %v356 = vld [vmem:[%s2 + $0x10] sm:$0xff]
        %v357 = vld [vmem:[%s2 + $0x18] sm:$0xff]
        %vm358 = vcmask 261120
        %v360 = vsel %vm358, %v352, 0
        %362 = vmatpush.msra.mxu0 0.0
        %363 = vmatpush.msra.mxu0 0.0
        %364 = vmatpush.msra.mxu0 0.0
        %365 = vmatpush.msra.mxu0 0.0
        %366 = vmatpush.msra.mxu0 0.0
        %367 = vmatpush.msra.mxu0 0.0
        %368 = vmatpush.msra.mxu0 0.0
        %369 = vmatpush.msra.mxu0 0.0
        %370 = vmatpush.msra.mxu0 0.0
        %371 = vmatpush.msra.mxu0 0.0
        %372 = vmatpush.msra.mxu0 0.0
        %373 = vmatpush.msra.mxu0 0.0
        %374 = vmatpush.msra.mxu0 %v357
        %375 = vmatpush.msra.mxu0 %v356
        %376 = vmatpush.msra.mxu0 %v355
        %377 = vmatpush.msra.mxu0 %v354
        %378 = vmatmul.f32.gmra.mxu0 %v360
        %v379 = vpop.f32.mrf.mxu0
        %v380 = vadd.f32 0.0, %v379
        %381 = vdwg.mxu0
        %v382 = vld [vmem:[%s3] sm:$0xff]
        %v383 = vld [vmem:[%s3 + $0x8] sm:$0xff]
        %v384 = vld [vmem:[%s3 + $0x10] sm:$0xff]
        %v385 = vld [vmem:[%s3 + $0x18] sm:$0xff]
        %v387 = vsel %vm358, %v353, 0
        %389 = vmatpush.msra.mxu0 0.0
        %390 = vmatpush.msra.mxu0 0.0
        %391 = vmatpush.msra.mxu0 0.0
        %392 = vmatpush.msra.mxu0 0.0
        %393 = vmatpush.msra.mxu0 0.0
        %394 = vmatpush.msra.mxu0 0.0
        %395 = vmatpush.msra.mxu0 0.0
        %396 = vmatpush.msra.mxu0 0.0
        %397 = vmatpush.msra.mxu0 0.0
        %398 = vmatpush.msra.mxu0 0.0
        %399 = vmatpush.msra.mxu0 0.0
        %400 = vmatpush.msra.mxu0 0.0
        %401 = vmatpush.msra.mxu0 %v385
        %402 = vmatpush.msra.mxu0 %v384
        %403 = vmatpush.msra.mxu0 %v383
        %404 = vmatpush.msra.mxu0 %v382
        %405 = vmatmul.f32.gmra.mxu0 %v387
        %v406 = vpop.f32.mrf.mxu0
        %v407 = vadd.f32 0.0, %v406
        %408 = vdwg.mxu0
        %v409 = vld [vmem:[%s4] sm:$0xff]
        %v410 = vld [vmem:[%s4 + $0x8] sm:$0xff]
        %v411 = vld [vmem:[%s4 + $0x10] sm:$0xff]
        %v412 = vld [vmem:[%s4 + $0x18] sm:$0xff]
        %413 = vmatpush.msra.mxu0 0.0
        %414 = vmatpush.msra.mxu0 0.0
        %415 = vmatpush.msra.mxu0 0.0
        %416 = vmatpush.msra.mxu0 0.0
        %417 = vmatpush.msra.mxu0 0.0
        %418 = vmatpush.msra.mxu0 0.0
        %419 = vmatpush.msra.mxu0 0.0
        %420 = vmatpush.msra.mxu0 0.0
        %421 = vmatpush.msra.mxu0 0.0
        %422 = vmatpush.msra.mxu0 0.0
        %423 = vmatpush.msra.mxu0 0.0
        %424 = vmatpush.msra.mxu0 0.0
        %425 = vmatpush.msra.mxu0 %v412
        %426 = vmatpush.msra.mxu0 %v411
        %427 = vmatpush.msra.mxu0 %v410
        %428 = vmatpush.msra.mxu0 %v409
        %429 = vmatmul.f32.gmra.mxu0 %v387
        %v430 = vpop.f32.mrf.mxu0
        %v431 = vadd.f32 0.0, %v430
        %432 = vdwg.mxu0
        %vm433 = vcmask 64512
        %v435 = vsel %vm433, %v380, 0
        %v438 = vsel %vm433, %v407, 0
        %440 = vmatpush.xpose.msra.mxu0 0.0
        %441 = vmatpush.xpose.msra.mxu0 0.0
        %442 = vmatpush.xpose.msra.mxu0 0.0
        %443 = vmatpush.xpose.msra.mxu0 0.0
        %444 = vmatpush.xpose.msra.mxu0 0.0
        %445 = vmatpush.xpose.msra.mxu0 0.0
        %446 = vmatpush.xpose.msra.mxu0 0.0
        %447 = vmatpush.xpose.msra.mxu0 0.0
        %448 = vmatpush.xpose.msra.mxu0 0.0
        %449 = vmatpush.xpose.msra.mxu0 0.0
        %450 = vmatpush.xpose.msra.mxu0 0.0
        %451 = vmatpush.xpose.msra.mxu0 0.0
        %452 = vmatpush.xpose.msra.mxu0 0.0
        %453 = vmatpush.xpose.msra.mxu0 0.0
        %454 = vmatpush.xpose.msra.mxu0 0.0
        %455 = vmatpush.xpose.msra.mxu0 %v438
        %456 = vmatmul.f32.gmra.mxu0 %v435
        %v457 = vpop.f32.mrf.mxu0
        %v458 = vadd.f32 0.0, %v457
        %459 = vdwg.mxu0
        %v460 = vld [vmem:[#allocation2] sm:$0xff]
        %v461 = vsel %vm433, %v458, -inf
        %462 = vmax.xlane.f32.xlu0 %v461
        %v463 = vpop.xlane.xlu0 %462
        %v464 = vmax.f32 %v460, %v463
        %v465 = vsub.f32 %v460, %v464
        %v466 = vmul.f32 %v465, 1.442695
        %v467 = vpow.pop %v466
        %469 = vset.pattern.permute.xlu0 0
        %470 = vperm.xlu0 %469, %v464
        %v471 = vpop.permute.xlu0 %470
        %v473 = vsub.f32 %v458, %v471
        %v474 = vmul.f32 %v473, 1.442695
        %v475 = vpow.pop %v474
        %v476 = vld [vmem:[#allocation3] sm:$0xff]
        %v477 = vmul.f32 %v467, %v476
        %v478 = vsel %vm433, %v475, 0.0
        %479 = vadd.xlane.f32.xlu0 %v478
        %v480 = vpop.xlane.xlu0 %479
        %v481 = vadd.f32 %v477, %v480
        %vm482 = vcmask 7168
        %483 = vst.msk [vmem:[#allocation3] sm:$0xff] %vm482, %v481
        %v484 = vld [vmem:[#allocation4] sm:$0xff]
        %486 = vset.pattern.permute.xlu0 0
        %487 = vperm.xlu0 %486, %v467
        %v488 = vpop.permute.xlu0 %487
        %v490 = vmul.f32 %v488, %v484
        %v492 = vsel %vm433, %v475, 0
        %494 = vmatpush.msra.mxu0 0.0
        %495 = vmatpush.msra.mxu0 0.0
        %496 = vmatpush.msra.mxu0 0.0
        %497 = vmatpush.msra.mxu0 0.0
        %498 = vmatpush.msra.mxu0 0.0
        %499 = vmatpush.msra.mxu0 0.0
        %500 = vmatpush.msra.mxu0 0.0
        %501 = vmatpush.msra.mxu0 0.0
        %502 = vmatpush.msra.mxu0 0.0
        %503 = vmatpush.msra.mxu0 0.0
        %504 = vmatpush.msra.mxu0 0.0
        %505 = vmatpush.msra.mxu0 0.0
        %506 = vmatpush.msra.mxu0 0.0
        %507 = vmatpush.msra.mxu0 0.0
        %508 = vmatpush.msra.mxu0 0.0
        %509 = vmatpush.msra.mxu0 %v431
        %510 = vmatmul.f32.gmra.mxu0 %v492
        %v511 = vpop.f32.mrf.mxu0
        %v512 = vadd.f32 0.0, %v511
        %513 = vdwg.mxu0
        %v514 = vadd.f32 %v490, %v512
        %515 = vst.msk [vmem:[#allocation4] sm:$0xff] %vm433, %v514
        %516 = vst.msk [vmem:[#allocation2] sm:$0xff] %vm482, %v464
        %s517 = scalar_lea.vmem %s2, 32
        %v518 = vld [vmem:[%s517] sm:$0xff]
        %v519 = vld [vmem:[%s517 + $0x8] sm:$0xff]
        %v520 = vld [vmem:[%s517 + $0x10] sm:$0xff]
        %v521 = vld [vmem:[%s517 + $0x18] sm:$0xff]
        %522 = vmatpush.msra.mxu0 0.0
        %523 = vmatpush.msra.mxu0 0.0
        %524 = vmatpush.msra.mxu0 0.0
        %525 = vmatpush.msra.mxu0 0.0
        %526 = vmatpush.msra.mxu0 0.0
        %527 = vmatpush.msra.mxu0 0.0
        %528 = vmatpush.msra.mxu0 0.0
        %529 = vmatpush.msra.mxu0 0.0
        %530 = vmatpush.msra.mxu0 0.0
        %531 = vmatpush.msra.mxu0 0.0
        %532 = vmatpush.msra.mxu0 0.0
        %533 = vmatpush.msra.mxu0 0.0
        %534 = vmatpush.msra.mxu0 %v521
        %535 = vmatpush.msra.mxu0 %v520
        %536 = vmatpush.msra.mxu0 %v519
        %537 = vmatpush.msra.mxu0 %v518
        %538 = vmatmul.f32.gmra.mxu0 %v360
        %v539 = vpop.f32.mrf.mxu0
        %v540 = vadd.f32 0.0, %v539
        %541 = vdwg.mxu0
        %s542 = scalar_lea.vmem %s3, 32
        %v543 = vld [vmem:[%s542] sm:$0xff]
        %v544 = vld [vmem:[%s542 + $0x8] sm:$0xff]
        %v545 = vld [vmem:[%s542 + $0x10] sm:$0xff]
        %v546 = vld [vmem:[%s542 + $0x18] sm:$0xff]
        %547 = vmatpush.msra.mxu0 0.0
        %548 = vmatpush.msra.mxu0 0.0
        %549 = vmatpush.msra.mxu0 0.0
        %550 = vmatpush.msra.mxu0 0.0
        %551 = vmatpush.msra.mxu0 0.0
        %552 = vmatpush.msra.mxu0 0.0
        %553 = vmatpush.msra.mxu0 0.0
        %554 = vmatpush.msra.mxu0 0.0
        %555 = vmatpush.msra.mxu0 0.0
        %556 = vmatpush.msra.mxu0 0.0
        %557 = vmatpush.msra.mxu0 0.0
        %558 = vmatpush.msra.mxu0 0.0
        %559 = vmatpush.msra.mxu0 %v546
        %560 = vmatpush.msra.mxu0 %v545
        %561 = vmatpush.msra.mxu0 %v544
        %562 = vmatpush.msra.mxu0 %v543
        %563 = vmatmul.f32.gmra.mxu0 %v387
        %v564 = vpop.f32.mrf.mxu0
        %v565 = vadd.f32 0.0, %v564
        %566 = vdwg.mxu0
        %s567 = scalar_lea.vmem %s4, 32
        %v568 = vld [vmem:[%s567] sm:$0xff]
        %v569 = vld [vmem:[%s567 + $0x8] sm:$0xff]
        %v570 = vld [vmem:[%s567 + $0x10] sm:$0xff]
        %v571 = vld [vmem:[%s567 + $0x18] sm:$0xff]
        %572 = vmatpush.msra.mxu0 0.0
        %573 = vmatpush.msra.mxu0 0.0
        %574 = vmatpush.msra.mxu0 0.0
        %575 = vmatpush.msra.mxu0 0.0
        %576 = vmatpush.msra.mxu0 0.0
        %577 = vmatpush.msra.mxu0 0.0
        %578 = vmatpush.msra.mxu0 0.0
        %579 = vmatpush.msra.mxu0 0.0
        %580 = vmatpush.msra.mxu0 0.0
        %581 = vmatpush.msra.mxu0 0.0
        %582 = vmatpush.msra.mxu0 0.0
        %583 = vmatpush.msra.mxu0 0.0
        %584 = vmatpush.msra.mxu0 %v571
        %585 = vmatpush.msra.mxu0 %v570
        %586 = vmatpush.msra.mxu0 %v569
        %587 = vmatpush.msra.mxu0 %v568
        %588 = vmatmul.f32.gmra.mxu0 %v387
        %v589 = vpop.f32.mrf.mxu0
        %v590 = vadd.f32 0.0, %v589
        %591 = vdwg.mxu0
        %v593 = vsel %vm433, %v540, 0
        %v596 = vsel %vm433, %v565, 0
        %598 = vmatpush.xpose.msra.mxu0 0.0
        %599 = vmatpush.xpose.msra.mxu0 0.0
        %600 = vmatpush.xpose.msra.mxu0 0.0
        %601 = vmatpush.xpose.msra.mxu0 0.0
        %602 = vmatpush.xpose.msra.mxu0 0.0
        %603 = vmatpush.xpose.msra.mxu0 0.0
        %604 = vmatpush.xpose.msra.mxu0 0.0
        %605 = vmatpush.xpose.msra.mxu0 0.0
        %606 = vmatpush.xpose.msra.mxu0 0.0
        %607 = vmatpush.xpose.msra.mxu0 0.0
        %608 = vmatpush.xpose.msra.mxu0 0.0
        %609 = vmatpush.xpose.msra.mxu0 0.0
        %610 = vmatpush.xpose.msra.mxu0 0.0
        %611 = vmatpush.xpose.msra.mxu0 0.0
        %612 = vmatpush.xpose.msra.mxu0 0.0
        %613 = vmatpush.xpose.msra.mxu0 %v596
        %614 = vmatmul.f32.gmra.mxu0 %v593
        %v615 = vpop.f32.mrf.mxu0
        %v616 = vadd.f32 0.0, %v615
        %617 = vdwg.mxu0
        %s618 = scalar_lea.vmem [#allocation2], 8
        %v619 = vld [vmem:[%s618] sm:$0xff]
        %v620 = vsel %vm433, %v616, -inf
        %621 = vmax.xlane.f32.xlu0 %v620
        %v622 = vpop.xlane.xlu0 %621
        %v623 = vmax.f32 %v619, %v622
        %v624 = vsub.f32 %v619, %v623
        %v625 = vmul.f32 %v624, 1.442695
        %v626 = vpow.pop %v625
        %628 = vset.pattern.permute.xlu0 0
        %629 = vperm.xlu0 %628, %v623
        %v630 = vpop.permute.xlu0 %629
        %v632 = vsub.f32 %v616, %v630
        %v633 = vmul.f32 %v632, 1.442695
        %v634 = vpow.pop %v633
        %s635 = scalar_lea.vmem [#allocation3], 8
        %v636 = vld [vmem:[%s635] sm:$0xff]
        %v637 = vmul.f32 %v626, %v636
        %v638 = vsel %vm433, %v634, 0.0
        %639 = vadd.xlane.f32.xlu0 %v638
        %v640 = vpop.xlane.xlu0 %639
        %v641 = vadd.f32 %v637, %v640
        %642 = vst.msk [vmem:[%s635] sm:$0xff] %vm482, %v641
        %s643 = scalar_lea.vmem [#allocation4], 8
        %v644 = vld [vmem:[%s643] sm:$0xff]
        %646 = vset.pattern.permute.xlu0 0
        %647 = vperm.xlu0 %646, %v626
        %v648 = vpop.permute.xlu0 %647
        %v650 = vmul.f32 %v648, %v644
        %v652 = vsel %vm433, %v634, 0
        %654 = vmatpush.msra.mxu0 0.0
        %655 = vmatpush.msra.mxu0 0.0
        %656 = vmatpush.msra.mxu0 0.0
        %657 = vmatpush.msra.mxu0 0.0
        %658 = vmatpush.msra.mxu0 0.0
        %659 = vmatpush.msra.mxu0 0.0
        %660 = vmatpush.msra.mxu0 0.0
        %661 = vmatpush.msra.mxu0 0.0
        %662 = vmatpush.msra.mxu0 0.0
        %663 = vmatpush.msra.mxu0 0.0
        %664 = vmatpush.msra.mxu0 0.0
        %665 = vmatpush.msra.mxu0 0.0
        %666 = vmatpush.msra.mxu0 0.0
        %667 = vmatpush.msra.mxu0 0.0
        %668 = vmatpush.msra.mxu0 0.0
        %669 = vmatpush.msra.mxu0 %v590
        %670 = vmatmul.f32.gmra.mxu0 %v652
        %v671 = vpop.f32.mrf.mxu0
        %v672 = vadd.f32 0.0, %v671
        %673 = vdwg.mxu0
        %v674 = vadd.f32 %v650, %v672
        %675 = vst.msk [vmem:[%s643] sm:$0xff] %vm433, %v674
        %676 = vst.msk [vmem:[%s618] sm:$0xff] %vm482, %v623
        %s677 = scalar_lea.vmem %s2, 64
        %v678 = vld [vmem:[%s677] sm:$0xff]
        %v679 = vld [vmem:[%s677 + $0x8] sm:$0xff]
        %v680 = vld [vmem:[%s677 + $0x10] sm:$0xff]
        %v681 = vld [vmem:[%s677 + $0x18] sm:$0xff]
        %682 = vmatpush.msra.mxu0 0.0
        %683 = vmatpush.msra.mxu0 0.0
        %684 = vmatpush.msra.mxu0 0.0
        %685 = vmatpush.msra.mxu0 0.0
        %686 = vmatpush.msra.mxu0 0.0
        %687 = vmatpush.msra.mxu0 0.0
        %688 = vmatpush.msra.mxu0 0.0
        %689 = vmatpush.msra.mxu0 0.0
        %690 = vmatpush.msra.mxu0 0.0
        %691 = vmatpush.msra.mxu0 0.0
        %692 = vmatpush.msra.mxu0 0.0
        %693 = vmatpush.msra.mxu0 0.0
        %694 = vmatpush.msra.mxu0 %v681
        %695 = vmatpush.msra.mxu0 %v680
        %696 = vmatpush.msra.mxu0 %v679
        %697 = vmatpush.msra.mxu0 %v678
        %698 = vmatmul.f32.gmra.mxu0 %v360
        %v699 = vpop.f32.mrf.mxu0
        %v700 = vadd.f32 0.0, %v699
        %701 = vdwg.mxu0
        %s702 = scalar_lea.vmem %s3, 64
        %v703 = vld [vmem:[%s702] sm:$0xff]
        %v704 = vld [vmem:[%s702 + $0x8] sm:$0xff]
        %v705 = vld [vmem:[%s702 + $0x10] sm:$0xff]
        %v706 = vld [vmem:[%s702 + $0x18] sm:$0xff]
        %707 = vmatpush.msra.mxu0 0.0
        %708 = vmatpush.msra.mxu0 0.0
        %709 = vmatpush.msra.mxu0 0.0
        %710 = vmatpush.msra.mxu0 0.0
        %711 = vmatpush.msra.mxu0 0.0
        %712 = vmatpush.msra.mxu0 0.0
        %713 = vmatpush.msra.mxu0 0.0
        %714 = vmatpush.msra.mxu0 0.0
        %715 = vmatpush.msra.mxu0 0.0
        %716 = vmatpush.msra.mxu0 0.0
        %717 = vmatpush.msra.mxu0 0.0
        %718 = vmatpush.msra.mxu0 0.0
        %719 = vmatpush.msra.mxu0 %v706
        %720 = vmatpush.msra.mxu0 %v705
        %721 = vmatpush.msra.mxu0 %v704
        %722 = vmatpush.msra.mxu0 %v703
        %723 = vmatmul.f32.gmra.mxu0 %v387
        %v724 = vpop.f32.mrf.mxu0
        %v725 = vadd.f32 0.0, %v724
        %726 = vdwg.mxu0
        %s727 = scalar_lea.vmem %s4, 64
        %v728 = vld [vmem:[%s727] sm:$0xff]
        %v729 = vld [vmem:[%s727 + $0x8] sm:$0xff]
        %v730 = vld [vmem:[%s727 + $0x10] sm:$0xff]
        %v731 = vld [vmem:[%s727 + $0x18] sm:$0xff]
        %732 = vmatpush.msra.mxu0 0.0
        %733 = vmatpush.msra.mxu0 0.0
        %734 = vmatpush.msra.mxu0 0.0
        %735 = vmatpush.msra.mxu0 0.0
        %736 = vmatpush.msra.mxu0 0.0
        %737 = vmatpush.msra.mxu0 0.0
        %738 = vmatpush.msra.mxu0 0.0
        %739 = vmatpush.msra.mxu0 0.0
        %740 = vmatpush.msra.mxu0 0.0
        %741 = vmatpush.msra.mxu0 0.0
        %742 = vmatpush.msra.mxu0 0.0
        %743 = vmatpush.msra.mxu0 0.0
        %744 = vmatpush.msra.mxu0 %v731
        %745 = vmatpush.msra.mxu0 %v730
        %746 = vmatpush.msra.mxu0 %v729
        %747 = vmatpush.msra.mxu0 %v728
        %748 = vmatmul.f32.gmra.mxu0 %v387
        %v749 = vpop.f32.mrf.mxu0
        %v750 = vadd.f32 0.0, %v749
        %751 = vdwg.mxu0
        %v753 = vsel %vm433, %v700, 0
        %v756 = vsel %vm433, %v725, 0
        %758 = vmatpush.xpose.msra.mxu0 0.0
        %759 = vmatpush.xpose.msra.mxu0 0.0
        %760 = vmatpush.xpose.msra.mxu0 0.0
        %761 = vmatpush.xpose.msra.mxu0 0.0
        %762 = vmatpush.xpose.msra.mxu0 0.0
        %763 = vmatpush.xpose.msra.mxu0 0.0
        %764 = vmatpush.xpose.msra.mxu0 0.0
        %765 = vmatpush.xpose.msra.mxu0 0.0
        %766 = vmatpush.xpose.msra.mxu0 0.0
        %767 = vmatpush.xpose.msra.mxu0 0.0
        %768 = vmatpush.xpose.msra.mxu0 0.0
        %769 = vmatpush.xpose.msra.mxu0 0.0
        %770 = vmatpush.xpose.msra.mxu0 0.0
        %771 = vmatpush.xpose.msra.mxu0 0.0
        %772 = vmatpush.xpose.msra.mxu0 0.0
        %773 = vmatpush.xpose.msra.mxu0 %v756
        %774 = vmatmul.f32.gmra.mxu0 %v753
        %v775 = vpop.f32.mrf.mxu0
        %v776 = vadd.f32 0.0, %v775
        %777 = vdwg.mxu0
        %s778 = scalar_lea.vmem [#allocation2], 16
        %v779 = vld [vmem:[%s778] sm:$0xff]
        %v780 = vsel %vm433, %v776, -inf
        %781 = vmax.xlane.f32.xlu0 %v780
        %v782 = vpop.xlane.xlu0 %781
        %v783 = vmax.f32 %v779, %v782
        %v784 = vsub.f32 %v779, %v783
        %v785 = vmul.f32 %v784, 1.442695
        %v786 = vpow.pop %v785
        %788 = vset.pattern.permute.xlu0 0
        %789 = vperm.xlu0 %788, %v783
        %v790 = vpop.permute.xlu0 %789
        %v792 = vsub.f32 %v776, %v790
        %v793 = vmul.f32 %v792, 1.442695
        %v794 = vpow.pop %v793
        %s795 = scalar_lea.vmem [#allocation3], 16
        %v796 = vld [vmem:[%s795] sm:$0xff]
        %v797 = vmul.f32 %v786, %v796
        %v798 = vsel %vm433, %v794, 0.0
        %799 = vadd.xlane.f32.xlu0 %v798
        %v800 = vpop.xlane.xlu0 %799
        %v801 = vadd.f32 %v797, %v800
        %802 = vst.msk [vmem:[%s795] sm:$0xff] %vm482, %v801
        %s803 = scalar_lea.vmem [#allocation4], 16
        %v804 = vld [vmem:[%s803] sm:$0xff]
        %806 = vset.pattern.permute.xlu0 0
        %807 = vperm.xlu0 %806, %v786
        %v808 = vpop.permute.xlu0 %807
        %v810 = vmul.f32 %v808, %v804
        %v812 = vsel %vm433, %v794, 0
        %814 = vmatpush.msra.mxu0 0.0
        %815 = vmatpush.msra.mxu0 0.0
        %816 = vmatpush.msra.mxu0 0.0
        %817 = vmatpush.msra.mxu0 0.0
        %818 = vmatpush.msra.mxu0 0.0
        %819 = vmatpush.msra.mxu0 0.0
        %820 = vmatpush.msra.mxu0 0.0
        %821 = vmatpush.msra.mxu0 0.0
        %822 = vmatpush.msra.mxu0 0.0
        %823 = vmatpush.msra.mxu0 0.0
        %824 = vmatpush.msra.mxu0 0.0
        %825 = vmatpush.msra.mxu0 0.0
        %826 = vmatpush.msra.mxu0 0.0
        %827 = vmatpush.msra.mxu0 0.0
        %828 = vmatpush.msra.mxu0 0.0
        %829 = vmatpush.msra.mxu0 %v750
        %830 = vmatmul.f32.gmra.mxu0 %v812
        %v831 = vpop.f32.mrf.mxu0
        %v832 = vadd.f32 0.0, %v831
        %833 = vdwg.mxu0
        %v834 = vadd.f32 %v810, %v832
        %835 = vst.msk [vmem:[%s803] sm:$0xff] %vm433, %v834
        %836 = vst.msk [vmem:[%s778] sm:$0xff] %vm482, %v783
        %s837 = scalar_lea.vmem %s2, 96
        %v838 = vld [vmem:[%s837] sm:$0xff]
        %v839 = vld [vmem:[%s837 + $0x8] sm:$0xff]
        %v840 = vld [vmem:[%s837 + $0x10] sm:$0xff]
        %v841 = vld [vmem:[%s837 + $0x18] sm:$0xff]
        %842 = vmatpush.msra.mxu0 0.0
        %843 = vmatpush.msra.mxu0 0.0
        %844 = vmatpush.msra.mxu0 0.0
        %845 = vmatpush.msra.mxu0 0.0
        %846 = vmatpush.msra.mxu0 0.0
        %847 = vmatpush.msra.mxu0 0.0
        %848 = vmatpush.msra.mxu0 0.0
        %849 = vmatpush.msra.mxu0 0.0
        %850 = vmatpush.msra.mxu0 0.0
        %851 = vmatpush.msra.mxu0 0.0
        %852 = vmatpush.msra.mxu0 0.0
        %853 = vmatpush.msra.mxu0 0.0
        %854 = vmatpush.msra.mxu0 %v841
        %855 = vmatpush.msra.mxu0 %v840
        %856 = vmatpush.msra.mxu0 %v839
        %857 = vmatpush.msra.mxu0 %v838
        %858 = vmatmul.f32.gmra.mxu0 %v360
        %v859 = vpop.f32.mrf.mxu0
        %v860 = vadd.f32 0.0, %v859
        %861 = vdwg.mxu0
        %s862 = scalar_lea.vmem %s3, 96
        %v863 = vld [vmem:[%s862] sm:$0xff]
        %v864 = vld [vmem:[%s862 + $0x8] sm:$0xff]
        %v865 = vld [vmem:[%s862 + $0x10] sm:$0xff]
        %v866 = vld [vmem:[%s862 + $0x18] sm:$0xff]
        %867 = vmatpush.msra.mxu0 0.0
        %868 = vmatpush.msra.mxu0 0.0
        %869 = vmatpush.msra.mxu0 0.0
        %870 = vmatpush.msra.mxu0 0.0
        %871 = vmatpush.msra.mxu0 0.0
        %872 = vmatpush.msra.mxu0 0.0
        %873 = vmatpush.msra.mxu0 0.0
        %874 = vmatpush.msra.mxu0 0.0
        %875 = vmatpush.msra.mxu0 0.0
        %876 = vmatpush.msra.mxu0 0.0
        %877 = vmatpush.msra.mxu0 0.0
        %878 = vmatpush.msra.mxu0 0.0
        %879 = vmatpush.msra.mxu0 %v866
        %880 = vmatpush.msra.mxu0 %v865
        %881 = vmatpush.msra.mxu0 %v864
        %882 = vmatpush.msra.mxu0 %v863
        %883 = vmatmul.f32.gmra.mxu0 %v387
        %v884 = vpop.f32.mrf.mxu0
        %v885 = vadd.f32 0.0, %v884
        %886 = vdwg.mxu0
        %s887 = scalar_lea.vmem %s4, 96
        %v888 = vld [vmem:[%s887] sm:$0xff]
        %v889 = vld [vmem:[%s887 + $0x8] sm:$0xff]
        %v890 = vld [vmem:[%s887 + $0x10] sm:$0xff]
        %v891 = vld [vmem:[%s887 + $0x18] sm:$0xff]
        %892 = vmatpush.msra.mxu0 0.0
        %893 = vmatpush.msra.mxu0 0.0
        %894 = vmatpush.msra.mxu0 0.0
        %895 = vmatpush.msra.mxu0 0.0
        %896 = vmatpush.msra.mxu0 0.0
        %897 = vmatpush.msra.mxu0 0.0
        %898 = vmatpush.msra.mxu0 0.0
        %899 = vmatpush.msra.mxu0 0.0
        %900 = vmatpush.msra.mxu0 0.0
        %901 = vmatpush.msra.mxu0 0.0
        %902 = vmatpush.msra.mxu0 0.0
        %903 = vmatpush.msra.mxu0 0.0
        %904 = vmatpush.msra.mxu0 %v891
        %905 = vmatpush.msra.mxu0 %v890
        %906 = vmatpush.msra.mxu0 %v889
        %907 = vmatpush.msra.mxu0 %v888
        %908 = vmatmul.f32.gmra.mxu0 %v387
        %v909 = vpop.f32.mrf.mxu0
        %v910 = vadd.f32 0.0, %v909
        %911 = vdwg.mxu0
        %v913 = vsel %vm433, %v860, 0
        %v916 = vsel %vm433, %v885, 0
        %918 = vmatpush.xpose.msra.mxu0 0.0
        %919 = vmatpush.xpose.msra.mxu0 0.0
        %920 = vmatpush.xpose.msra.mxu0 0.0
        %921 = vmatpush.xpose.msra.mxu0 0.0
        %922 = vmatpush.xpose.msra.mxu0 0.0
        %923 = vmatpush.xpose.msra.mxu0 0.0
        %924 = vmatpush.xpose.msra.mxu0 0.0
        %925 = vmatpush.xpose.msra.mxu0 0.0
        %926 = vmatpush.xpose.msra.mxu0 0.0
        %927 = vmatpush.xpose.msra.mxu0 0.0
        %928 = vmatpush.xpose.msra.mxu0 0.0
        %929 = vmatpush.xpose.msra.mxu0 0.0
        %930 = vmatpush.xpose.msra.mxu0 0.0
        %931 = vmatpush.xpose.msra.mxu0 0.0
        %932 = vmatpush.xpose.msra.mxu0 0.0
        %933 = vmatpush.xpose.msra.mxu0 %v916
        %934 = vmatmul.f32.gmra.mxu0 %v913
        %v935 = vpop.f32.mrf.mxu0
        %v936 = vadd.f32 0.0, %v935
        %937 = vdwg.mxu0
        %s938 = scalar_lea.vmem [#allocation2], 24
        %v939 = vld [vmem:[%s938] sm:$0xff]
        %v940 = vsel %vm433, %v936, -inf
        %941 = vmax.xlane.f32.xlu0 %v940
        %v942 = vpop.xlane.xlu0 %941
        %v943 = vmax.f32 %v939, %v942
        %v944 = vsub.f32 %v939, %v943
        %v945 = vmul.f32 %v944, 1.442695
        %v946 = vpow.pop %v945
        %948 = vset.pattern.permute.xlu0 0
        %949 = vperm.xlu0 %948, %v943
        %v950 = vpop.permute.xlu0 %949
        %v952 = vsub.f32 %v936, %v950
        %v953 = vmul.f32 %v952, 1.442695
        %v954 = vpow.pop %v953
        %s955 = scalar_lea.vmem [#allocation3], 24
        %v956 = vld [vmem:[%s955] sm:$0xff]
        %v957 = vmul.f32 %v946, %v956
        %v958 = vsel %vm433, %v954, 0.0
        %959 = vadd.xlane.f32.xlu0 %v958
        %v960 = vpop.xlane.xlu0 %959
        %v961 = vadd.f32 %v957, %v960
        %962 = vst.msk [vmem:[%s955] sm:$0xff] %vm482, %v961
        %s963 = scalar_lea.vmem [#allocation4], 24
        %v964 = vld [vmem:[%s963] sm:$0xff]
        %966 = vset.pattern.permute.xlu0 0
        %967 = vperm.xlu0 %966, %v946
        %v968 = vpop.permute.xlu0 %967
        %v970 = vmul.f32 %v968, %v964
        %v972 = vsel %vm433, %v954, 0
        %974 = vmatpush.msra.mxu0 0.0
        %975 = vmatpush.msra.mxu0 0.0
        %976 = vmatpush.msra.mxu0 0.0
        %977 = vmatpush.msra.mxu0 0.0
        %978 = vmatpush.msra.mxu0 0.0
        %979 = vmatpush.msra.mxu0 0.0
        %980 = vmatpush.msra.mxu0 0.0
        %981 = vmatpush.msra.mxu0 0.0
        %982 = vmatpush.msra.mxu0 0.0
        %983 = vmatpush.msra.mxu0 0.0
        %984 = vmatpush.msra.mxu0 0.0
        %985 = vmatpush.msra.mxu0 0.0
        %986 = vmatpush.msra.mxu0 0.0
        %987 = vmatpush.msra.mxu0 0.0
        %988 = vmatpush.msra.mxu0 0.0
        %989 = vmatpush.msra.mxu0 %v910
        %990 = vmatmul.f32.gmra.mxu0 %v972
        %v991 = vpop.f32.mrf.mxu0
        %v992 = vadd.f32 0.0, %v991
        %993 = vdwg.mxu0
        %v994 = vadd.f32 %v970, %v992
        %995 = vst.msk [vmem:[%s963] sm:$0xff] %vm433, %v994
        %996 = vst.msk [vmem:[%s938] sm:$0xff] %vm482, %v943
        // Predicated region
        $region53: #{tpu_custom_call.1} parent=47 // pred_check
          %p997 = pneg %p334
        $region54: #{tpu_custom_call.1} parent=47 // pred_check_branch
          %999 = sbr.rel (%p997) target = $region56
        $region55: #{tpu_custom_call.1} parent=47 // pred_region
          %v1000 = vld [vmem:[#allocation4] sm:$0xff]
          %v1001 = vld [vmem:[#allocation3] sm:$0xff]
          %1003 = vset.pattern.permute.xlu0 0
          %1004 = vperm.xlu0 %1003, %v1001
          %v1005 = vpop.permute.xlu0 %1004
          %v1007 = vrcp.pop %v1005
          %v1008 = vmul.f32 %v1005, %v1007
          %v1009 = vsub.f32 1.0, %v1008
          %v1010 = vmul.f32 %v1007, %v1009
          %v1011 = vadd.f32 %v1007, %v1010
          %vm1012 = vweird.f32 %v1005
          %vm1013 = vweird.f32 %v1007
          %vm1014 = vmor %vm1012, %vm1013
          %v1015 = vsel %vm1014, %v1007, %v1011
          %v1016 = vand.u32 2147483647, %v1005
          %vm1017 = vcmp.eq.f32.partialorder %v1016, 8.507059e+37
          %v1018 = vand.u32 %v1005, 2147483648
          %v1019 = vor.u32 1.1754944e-38, %v1018
          %v1020 = vsel %vm1017, %v1019, %v1015
          %v1021 = vmul.f32 %v1000, %v1020
          %v1022 = vld [vmem:[%s5] sm:$0xff]
          %v1023 = vld [vmem:[%s643] sm:$0xff]
          %v1024 = vld [vmem:[%s635] sm:$0xff]
          %1026 = vset.pattern.permute.xlu0 0
          %1027 = vperm.xlu0 %1026, %v1024
          %v1028 = vpop.permute.xlu0 %1027
          %v1030 = vrcp.pop %v1028
          %v1031 = vmul.f32 %v1028, %v1030
          %v1032 = vsub.f32 1.0, %v1031
          %v1033 = vmul.f32 %v1030, %v1032
          %v1034 = vadd.f32 %v1030, %v1033
          %vm1035 = vweird.f32 %v1028
          %vm1036 = vweird.f32 %v1030
          %vm1037 = vmor %vm1035, %vm1036
          %v1038 = vsel %vm1037, %v1030, %v1034
          %v1039 = vand.u32 2147483647, %v1028
          %vm1040 = vcmp.eq.f32.partialorder %v1039, 8.507059e+37
          %v1041 = vand.u32 %v1028, 2147483648
          %v1042 = vor.u32 1.1754944e-38, %v1041
          %v1043 = vsel %vm1040, %v1042, %v1038
          %v1044 = vmul.f32 %v1023, %v1043
          %s1045 = scalar_lea.vmem %s5, 8
          %v1046 = vld [vmem:[%s1045] sm:$0xff]
          %v1048 = vsel %vm433, %v1044, 0
          %1050 = vmatpush.msra.mxu0 0.0
          %1051 = vmatpush.msra.mxu0 0.0
          %1052 = vmatpush.msra.mxu0 0.0
          %1053 = vmatpush.msra.mxu0 0.0
          %1054 = vmatpush.msra.mxu0 0.0
          %1055 = vmatpush.msra.mxu0 0.0
          %1056 = vmatpush.msra.mxu0 0.0
          %1057 = vmatpush.msra.mxu0 0.0
          %1058 = vmatpush.msra.mxu0 0.0
          %1059 = vmatpush.msra.mxu0 0.0
          %1060 = vmatpush.msra.mxu0 0.0
          %1061 = vmatpush.msra.mxu0 0.0
          %1062 = vmatpush.msra.mxu0 0.0
          %1063 = vmatpush.msra.mxu0 0.0
          %1064 = vmatpush.msra.mxu0 0.0
          %1065 = vmatpush.msra.mxu0 %v1046
          %1066 = vmatmul.f32.gmra.mxu0 %v1048
          %v1067 = vpop.f32.mrf.mxu0
          %v1068 = vadd.f32 0.0, %v1067
          %1069 = vdwg.mxu0
          %v1071 = vsel %vm433, %v1021, 0
          %1073 = vmatpush.msra.mxu0 0.0
          %1074 = vmatpush.msra.mxu0 0.0
          %1075 = vmatpush.msra.mxu0 0.0
          %1076 = vmatpush.msra.mxu0 0.0
          %1077 = vmatpush.msra.mxu0 0.0
          %1078 = vmatpush.msra.mxu0 0.0
          %1079 = vmatpush.msra.mxu0 0.0
          %1080 = vmatpush.msra.mxu0 0.0
          %1081 = vmatpush.msra.mxu0 0.0
          %1082 = vmatpush.msra.mxu0 0.0
          %1083 = vmatpush.msra.mxu0 0.0
          %1084 = vmatpush.msra.mxu0 0.0
          %1085 = vmatpush.msra.mxu0 0.0
          %1086 = vmatpush.msra.mxu0 0.0
          %1087 = vmatpush.msra.mxu0 0.0
          %1088 = vmatpush.msra.mxu0 %v1022
          %1089 = vmatmul.f32.gmra.mxu0 %v1071
          %v1090 = vpop.f32.mrf.mxu0
          %v1091 = vadd.f32 %v1068, %v1090
          %1092 = vdwg.mxu0
          %v1093 = vld [vmem:[%s803] sm:$0xff]
          %v1094 = vld [vmem:[%s795] sm:$0xff]
          %1096 = vset.pattern.permute.xlu0 0
          %1097 = vperm.xlu0 %1096, %v1094
          %v1098 = vpop.permute.xlu0 %1097
          %v1100 = vrcp.pop %v1098
          %v1101 = vmul.f32 %v1098, %v1100
          %v1102 = vsub.f32 1.0, %v1101
          %v1103 = vmul.f32 %v1100, %v1102
          %v1104 = vadd.f32 %v1100, %v1103
          %vm1105 = vweird.f32 %v1098
          %vm1106 = vweird.f32 %v1100
          %vm1107 = vmor %vm1105, %vm1106
          %v1108 = vsel %vm1107, %v1100, %v1104
          %v1109 = vand.u32 2147483647, %v1098
          %vm1110 = vcmp.eq.f32.partialorder %v1109, 8.507059e+37
          %v1111 = vand.u32 %v1098, 2147483648
          %v1112 = vor.u32 1.1754944e-38, %v1111
          %v1113 = vsel %vm1110, %v1112, %v1108
          %v1114 = vmul.f32 %v1093, %v1113
          %s1115 = scalar_lea.vmem %s5, 16
          %v1116 = vld [vmem:[%s1115] sm:$0xff]
          %v1118 = vsel %vm433, %v1114, 0
          %1120 = vmatpush.msra.mxu0 0.0
          %1121 = vmatpush.msra.mxu0 0.0
          %1122 = vmatpush.msra.mxu0 0.0
          %1123 = vmatpush.msra.mxu0 0.0
          %1124 = vmatpush.msra.mxu0 0.0
          %1125 = vmatpush.msra.mxu0 0.0
          %1126 = vmatpush.msra.mxu0 0.0
          %1127 = vmatpush.msra.mxu0 0.0
          %1128 = vmatpush.msra.mxu0 0.0
          %1129 = vmatpush.msra.mxu0 0.0
          %1130 = vmatpush.msra.mxu0 0.0
          %1131 = vmatpush.msra.mxu0 0.0
          %1132 = vmatpush.msra.mxu0 0.0
          %1133 = vmatpush.msra.mxu0 0.0
          %1134 = vmatpush.msra.mxu0 0.0
          %1135 = vmatpush.msra.mxu0 %v1116
          %1136 = vmatmul.f32.gmra.mxu0 %v1118
          %v1137 = vpop.f32.mrf.mxu0
          %v1138 = vadd.f32 0.0, %v1137
          %1139 = vdwg.mxu0
          %v1140 = vadd.f32 %v1091, %v1138
          %v1141 = vld [vmem:[%s963] sm:$0xff]
          %v1142 = vld [vmem:[%s955] sm:$0xff]
          %1144 = vset.pattern.permute.xlu0 0
          %1145 = vperm.xlu0 %1144, %v1142
          %v1146 = vpop.permute.xlu0 %1145
          %v1148 = vrcp.pop %v1146
          %v1149 = vmul.f32 %v1146, %v1148
          %v1150 = vsub.f32 1.0, %v1149
          %v1151 = vmul.f32 %v1148, %v1150
          %v1152 = vadd.f32 %v1148, %v1151
          %vm1153 = vweird.f32 %v1146
          %vm1154 = vweird.f32 %v1148
          %vm1155 = vmor %vm1153, %vm1154
          %v1156 = vsel %vm1155, %v1148, %v1152
          %v1157 = vand.u32 2147483647, %v1146
          %vm1158 = vcmp.eq.f32.partialorder %v1157, 8.507059e+37
          %v1159 = vand.u32 %v1146, 2147483648
          %v1160 = vor.u32 1.1754944e-38, %v1159
          %v1161 = vsel %vm1158, %v1160, %v1156
          %v1162 = vmul.f32 %v1141, %v1161
          %s1163 = scalar_lea.vmem %s5, 24
          %v1164 = vld [vmem:[%s1163] sm:$0xff]
          %v1166 = vsel %vm433, %v1162, 0
          %1168 = vmatpush.msra.mxu0 0.0
          %1169 = vmatpush.msra.mxu0 0.0
          %1170 = vmatpush.msra.mxu0 0.0
          %1171 = vmatpush.msra.mxu0 0.0
          %1172 = vmatpush.msra.mxu0 0.0
          %1173 = vmatpush.msra.mxu0 0.0
          %1174 = vmatpush.msra.mxu0 0.0
          %1175 = vmatpush.msra.mxu0 0.0
          %1176 = vmatpush.msra.mxu0 0.0
          %1177 = vmatpush.msra.mxu0 0.0
          %1178 = vmatpush.msra.mxu0 0.0
          %1179 = vmatpush.msra.mxu0 0.0
          %1180 = vmatpush.msra.mxu0 0.0
          %1181 = vmatpush.msra.mxu0 0.0
          %1182 = vmatpush.msra.mxu0 0.0
          %1183 = vmatpush.msra.mxu0 %v1164
          %1184 = vmatmul.f32.gmra.mxu0 %v1166
          %v1185 = vpop.f32.mrf.mxu0
          %v1186 = vadd.f32 0.0, %v1185
          %1187 = vdwg.mxu0
          %v1188 = vadd.f32 %v1140, %v1186
          %v1189 = vld [vmem:[%s6] sm:$0x1]
          %v1191 = vperm.slane %v1189, 0
          %v1193 = vadd.f32 %v1188, %v1191
          %1194 = vst.msk [vmem:[%s319] sm:$0xff] %vm358, %v1193
        $region56: #{tpu_custom_call.1} parent=47 // pred_fallthru
          _
        %s1195 = sand.u32 %s211, 1
        %s1196 = scalar_lea.sflag [#allocation6], %s1195
        %s1197 = sand.u32 %s211, 1
        %s1198 = smul.addr %s1197, 8
        %s1199 = scalar_lea.vmem [#allocation5], %s1198
        // Predicated region
        $region57: #{tpu_custom_call.1} parent=47 // pred_check
          %p1200 = pneg %p221
        $region58: #{tpu_custom_call.1} parent=47 // pred_check_branch
          %1202 = sbr.rel (%p1200) target = $region60
        $region59: #{tpu_custom_call.1} parent=47 // pred_region
          %1204 = vsyncadd %s1196, 0
          %s1205 = sadd.s32 %s27, %s26
          %s1206 = smul.addr %s1205, 8
          %s1207 = scalar_lea.hbm %s7, %s1206
          %s1209 = sshll.u32 %s1199, 4
          %s1210 = int_to_ptr.vmem [resolvable:$true] %s1209
          %s1211 = sshll.u32 %s1207, 4
          %s1212 = int_to_ptr.hbm [resolvable:$true] %s1211
          %1214 = dma.vmem_to_hbm [thread:$0]  %s1210, 128, %s1212, %s1196
        $region60: #{tpu_custom_call.1} parent=47 // pred_fallthru
          _
      $region48: #{tpu_custom_call.1} parent=5 // pred_fallthru
        _
      %p1215 = scmp.le.s32.totalorder 2, %s16
      // Predicated region
      $region61: #{tpu_custom_call.1} parent=5 // pred_check
        %p1216 = pneg %p1215
      $region62: #{tpu_custom_call.1} parent=5 // pred_check_branch
        %1218 = sbr.rel (%p1216) target = $region64
      $region63: #{tpu_custom_call.1} parent=5 // pred_region
        %s1219 = ssub.s32 %s16, 2
        // Predicated region
        $region65: #{tpu_custom_call.1} parent=63 // pred_check
          %p1220 = pneg %p227
        $region66: #{tpu_custom_call.1} parent=63 // pred_check_branch
          %1222 = sbr.rel (%p1220) target = $region68
        $region67: #{tpu_custom_call.1} parent=63 // pred_region
          %s1223 = sand.u32 %s212, 1
          %s1224 = scalar_lea.sflag [#allocation6], %s1223
          %s1225 = sand.u32 %s212, 1
          %s1226 = smul.addr %s1225, 8
          %s1227 = scalar_lea.vmem [#allocation5], %s1226
          %1229 = dma.done %s1224, 128
        $region68: #{tpu_custom_call.1} parent=63 // pred_fallthru
          _
      $region64: #{tpu_custom_call.1} parent=5 // pred_fallthru
        _
    $region6: #{tpu_custom_call.1} parent=1 // loop_footer
      %s20 = sadd.s32 1, %s16
    $region7: #{tpu_custom_call.1} parent=1 // loop_footer_branch
      %15 = sbr.rel target = $region3
    $region8: #{tpu_custom_call.1} parent=1 // loop_exit
      _
    %1230 = vsyncpa [#allocation6], 1
    %s1231 = scalar_lea.sflag [#allocation6], 1
    %1232 = vsyncpa %s1231, 1

</llo_original>
